<compile_context>
chip_gen: v5e
topology: v5e:2x2
jax: 0.10.0
libtpu: 0.0.40
codegen_flags: <defaults>
</compile_context>

<pallas_src>
import jax
import jax.numpy as jnp
from jax.experimental import pallas as pl
from jax.experimental.pallas import tpu as pltpu


def _interp_matrix(out_size: int, in_size: int) -> jnp.ndarray:
    """Row-stochastic bilinear interpolation matrix matching PyTorch
    F.interpolate(mode='bilinear', align_corners=False)."""
    if out_size == in_size:
        return jnp.eye(out_size, dtype=jnp.float32)
    scale = in_size / out_size
    dst = jnp.arange(out_size, dtype=jnp.float32)
    src = (dst + 0.5) * scale - 0.5
    src = jnp.maximum(src, 0.0)                       # PyTorch clamps negatives to 0
    i0 = jnp.floor(src).astype(jnp.int32)
    i0 = jnp.minimum(i0, in_size - 1)
    i1 = jnp.minimum(i0 + 1, in_size - 1)
    lam1 = src - i0.astype(jnp.float32)
    lam0 = 1.0 - lam1
    rows = jnp.arange(out_size)
    W = jnp.zeros((out_size, in_size), dtype=jnp.float32)
    W = W.at[rows, i0].add(lam0)
    W = W.at[rows, i1].add(lam1)
    return W


def _round_up(x: int, m: int) -> int:
    return ((x + m - 1) // m) * m


def _pos_interp_kernel(p_ref, wh_ref, ww_t_ref, out_ref):
    # p_ref    : (c_tile, H, W)        learned embedding tile (channel-tiled)
    # wh_ref   : (h_pad, H)  f32       row (height) weights, zero-padded rows
    # ww_t_ref : (W, w_pad)  f32       column (width) weights^T, zero-padded cols
    # out_ref  : (c_tile, h_pad, w_pad)  lane-dense interpolated output tile
    c_tile, H, W = p_ref.shape
    h_pad = wh_ref.shape[0]
    w_pad = ww_t_ref.shape[1]

    p = p_ref[...].astype(jnp.float32)                          # tiny, free for f32

    # Step 1: contract W.  Batched matmul over channels (canonical 'cij,cjk->cik').
    ww_b = jnp.broadcast_to(ww_t_ref[...][None, :, :], (c_tile, W, w_pad))
    t = jnp.einsum('cij,cjk->cik', p, ww_b,
                   preferred_element_type=jnp.float32,
                   precision=jax.lax.Precision.HIGHEST)          # (c_tile, H, w_pad)

    # Step 2: contract H.
    wh_b = jnp.broadcast_to(wh_ref[...][None, :, :], (c_tile, h_pad, H))
    out = jnp.einsum('cij,cjk->cik', wh_b, t,
                     preferred_element_type=jnp.float32,
                     precision=jax.lax.Precision.HIGHEST)        # (c_tile, h_pad, w_pad)

    out_ref[...] = out.astype(out_ref.dtype)


def position_embedding_learned_forward(pos_emb: jnp.ndarray,
                                        x: jnp.ndarray) -> jnp.ndarray:
    """pos_emb: (1, C, H, W) learned parameter; x: (bs, _, h, w) NCHW input.
    Returns (1, C, h, w) — the parameter's batch dim, as in the PyTorch module."""
    _, C, H, W = pos_emb.shape
    h, w = int(x.shape[2]), int(x.shape[3])

    # Identity path: return the parameter directly, no kernel launch.
    if h == H and w == W:
        return pos_emb

    # Tiny separable interpolation weights (a few KB total, vs. a multi-MB kron).
    wh = _interp_matrix(h, H)                                   # (h, H)
    ww = _interp_matrix(w, W)                                   # (w, W)

    # Pad for lane-dense stores (last dim multiple of 128) and 8-aligned sublanes.
    h_pad = _round_up(h, 8)
    w_pad = _round_up(w, 128)
    wh_p = jnp.zeros((h_pad, H), jnp.float32).at[:h, :].set(wh)
    ww_t = jnp.zeros((W, w_pad), jnp.float32).at[:, :w].set(ww.T)

    p = pos_emb[0]                                              # (C, H, W), no upcast

    # Channel-tiled grid: bounds per-step VMEM and (on v7x) shards across both TCs.
    c_tile = min(C, 8)
    grid = (pl.cdiv(C, c_tile),)

    out = pl.pallas_call(
        _pos_interp_kernel,
        out_shape=jax.ShapeDtypeStruct((C, h_pad, w_pad), pos_emb.dtype),
        grid=grid,
        in_specs=[
            pl.BlockSpec((c_tile, H, W), lambda i: (i, 0, 0)),
            pl.BlockSpec((h_pad, H), lambda i: (0, 0)),
            pl.BlockSpec((W, w_pad), lambda i: (0, 0)),
        ],
        out_specs=pl.BlockSpec((c_tile, h_pad, w_pad), lambda i: (i, 0, 0)),
        compiler_params=pltpu.CompilerParams(
            dimension_semantics=("parallel",)),
    )(p, wh_p, ww_t)

    # Slice off the alignment padding; output dtype already matches pos_emb.
    return out[:, :h, :w][None]


if __name__ == "__main__":
    key = jax.random.PRNGKey(0)
    k_param, k_x = jax.random.split(key)

    # Module config (small): num_pos_feats=8, H=W=16.
    num_pos_feats, H, W = 8, 16, 16
    # Deterministic truncated-normal init for the learned parameter.
    pos_emb = (0.02 * jax.random.truncated_normal(
        k_param, -2.0, 2.0, (1, num_pos_feats, H, W))).astype(jnp.float32)

    # --- Downsampling path: (h, w) != (H, W) so interpolation runs. ---
    x = jax.random.normal(k_x, (2, 4, 12, 12), dtype=jnp.float32)
    out = jax.block_until_ready(position_embedding_learned_forward(pos_emb, x))

    wh = _interp_matrix(x.shape[2], H)
    ww = _interp_matrix(x.shape[3], W)
    ref = jnp.einsum('hH,cHW,wW->chw', wh, pos_emb[0], ww,
                     precision=jax.lax.Precision.HIGHEST)[None]
    assert out.shape == (1, num_pos_feats, x.shape[2], x.shape[3]), out.shape
    assert jnp.allclose(out, ref, atol=1e-5, rtol=1e-5)

    # --- Upsampling path (also exercises the h/w padding + slice). ---
    x_up = jax.random.normal(k_x, (2, 4, 20, 24), dtype=jnp.float32)
    out_up = jax.block_until_ready(position_embedding_learned_forward(pos_emb, x_up))
    wh_u = _interp_matrix(20, H)
    ww_u = _interp_matrix(24, W)
    ref_up = jnp.einsum('hH,cHW,wW->chw', wh_u, pos_emb[0], ww_u,
                        precision=jax.lax.Precision.HIGHEST)[None]
    assert out_up.shape == (1, num_pos_feats, 20, 24), out_up.shape
    assert jnp.allclose(out_up, ref_up, atol=1e-5, rtol=1e-5)

    # --- Identity path (h == H, w == W): parameter returned unchanged, no kernel. ---
    x_same = jax.random.normal(k_x, (2, 4, H, W), dtype=jnp.float32)
    out_same = jax.block_until_ready(
        position_embedding_learned_forward(pos_emb, x_same))
    assert out_same.shape == pos_emb.shape
    assert jnp.allclose(out_same, pos_emb, atol=1e-6)

    print("KERNEL_OK")
</pallas_src>

<mosaic_0001>
module attributes {stable_mosaic.version = 11 : i64} {
  func.func @_pos_interp_kernel(%arg0: i32, %arg1: memref<8x16x16xf32, #tpu.memory_space<vmem>>, %arg2: memref<16x16xf32, #tpu.memory_space<vmem>>, %arg3: memref<16x128xf32, #tpu.memory_space<vmem>>, %arg4: memref<8x16x128xf32, #tpu.memory_space<vmem>>) attributes {dimension_semantics = [#tpu.dimension_semantics<parallel>], iteration_bounds = array<i64: 1>, scalar_prefetch = 0 : i64, scratch_operands = 0 : i64, tpu.core_type = #tpu.core_type<tc>, window_params = [{transform_indices = @transform_0, window_bounds = array<i64: 8, 16, 16>}, {pipeline_mode = #tpu.pipeline_mode<synchronous>, transform_indices = @transform_1, window_bounds = array<i64: 16, 16>}, {pipeline_mode = #tpu.pipeline_mode<synchronous>, transform_indices = @transform_2, window_bounds = array<i64: 16, 128>}, {transform_indices = @transform_3, window_bounds = array<i64: 8, 16, 128>}]} {
    %c0 = arith.constant 0 : index
    %c0_0 = arith.constant 0 : index
    %c0_1 = arith.constant 0 : index
    %0 = vector.load %arg1[%c0, %c0_0, %c0_1] : memref<8x16x16xf32, #tpu.memory_space<vmem>>, vector<8x16x16xf32>
    %c0_2 = arith.constant 0 : index
    %c0_3 = arith.constant 0 : index
    %1 = vector.load %arg3[%c0_2, %c0_3] : memref<16x128xf32, #tpu.memory_space<vmem>>, vector<16x128xf32>
    %2 = vector.shape_cast %1 : vector<16x128xf32> to vector<1x16x128xf32>
    %3 = vector.shape_cast %2 : vector<1x16x128xf32> to vector<1x16x128xf32>
    %4 = vector.broadcast %3 : vector<1x16x128xf32> to vector<8x16x128xf32>
    "tpu.trace_start"() <{level = 10 : i32, message = "cij,cjk->cik"}> : () -> ()
    %cst = arith.constant dense<0.000000e+00> : vector<8x16x128xf32>
    %5 = tpu.matmul %0, %4, %cst {dimension_numbers = #tpu.dot_dimension_numbers<[2], [1], [1], [2], [0, 0, 0, 1, 1, 2], [0], [0]>, precision = #tpu.contract_precision<fp32>} : vector<8x16x16xf32>, vector<8x16x128xf32>, vector<8x16x128xf32> -> vector<8x16x128xf32>
    "tpu.trace_stop"() : () -> ()
    %c0_4 = arith.constant 0 : index
    %c0_5 = arith.constant 0 : index
    %6 = vector.load %arg2[%c0_4, %c0_5] : memref<16x16xf32, #tpu.memory_space<vmem>>, vector<16x16xf32>
    %7 = vector.shape_cast %6 : vector<16x16xf32> to vector<1x16x16xf32>
    %8 = vector.shape_cast %7 : vector<1x16x16xf32> to vector<1x16x16xf32>
    %9 = vector.broadcast %8 : vector<1x16x16xf32> to vector<8x16x16xf32>
    "tpu.trace_start"() <{level = 10 : i32, message = "cij,cjk->cik"}> : () -> ()
    %cst_6 = arith.constant dense<0.000000e+00> : vector<8x16x128xf32>
    %10 = tpu.matmul %9, %5, %cst_6 {dimension_numbers = #tpu.dot_dimension_numbers<[2], [1], [1], [2], [0, 0, 0, 1, 1, 2], [0], [0]>, precision = #tpu.contract_precision<fp32>} : vector<8x16x16xf32>, vector<8x16x128xf32>, vector<8x16x128xf32> -> vector<8x16x128xf32>
    "tpu.trace_stop"() : () -> ()
    %c0_7 = arith.constant 0 : index
    %c0_8 = arith.constant 0 : index
    %c0_9 = arith.constant 0 : index
    %11 = vector.load %arg4[%c0_7, %c0_8, %c0_9] : memref<8x16x128xf32, #tpu.memory_space<vmem>>, vector<8x16x128xf32>
    tpu.vector_store %arg4[%c0_7, %c0_8, %c0_9], %10 {strides = array<i32>} : memref<8x16x128xf32, #tpu.memory_space<vmem>>, vector<8x16x128xf32>,
    return
  }
  func.func @transform_0(%arg0: i32) -> (i32, i32, i32) {
    %c0_i32 = arith.constant 0 : i32
    %c0_i32_0 = arith.constant 0 : i32
    %c0_i32_1 = arith.constant 0 : i32
    return %arg0, %c0_i32, %c0_i32_0 : i32, i32, i32
  }
  func.func @transform_1(%arg0: i32) -> (i32, i32) {
    %c0_i32 = arith.constant 0 : i32
    %c0_i32_0 = arith.constant 0 : i32
    %c0_i32_1 = arith.constant 0 : i32
    return %c0_i32, %c0_i32_0 : i32, i32
  }
  func.func @transform_2(%arg0: i32) -> (i32, i32) {
    %c0_i32 = arith.constant 0 : i32
    %c0_i32_0 = arith.constant 0 : i32
    %c0_i32_1 = arith.constant 0 : i32
    return %c0_i32, %c0_i32_0 : i32, i32
  }
  func.func @transform_3(%arg0: i32) -> (i32, i32, i32) {
    %c0_i32 = arith.constant 0 : i32
    %c0_i32_0 = arith.constant 0 : i32
    %c0_i32_1 = arith.constant 0 : i32
    return %arg0, %c0_i32, %c0_i32_0 : i32, i32, i32
  }
}

</mosaic_0001>

<llo_original>
// kernel: tpu_custom_call.1
$region0: #{tpu_custom_call.1}
  #allocation0 [shape = 'u32[]', space=smem, size = 0x4, offset = 0x4, fixed_abs, tag = 'smem constant byte address 0x4 - core index']
  #allocation1 [shape = 'u32[72,128]{1,0:T(1,128)}', space=vmem, size = 0x9000, scoped, tag = 'internal scratch']
  %s0 = inlined_call_operand.hbm [shape: f32[8,16,16], index: 0, kind: input, shape index: {}]
  %s1 = inlined_call_operand.hbm [shape: f32[16,16], index: 1, kind: input, shape index: {}]
  %s2 = inlined_call_operand.hbm [shape: f32[16,128], index: 2, kind: input, shape index: {}]
  %s3 = inlined_call_operand.hbm [shape: f32[8,16,128], index: 3, kind: output, shape index: {}]
  %s4 = sld [smem:[#allocation0]]
  $region34: #{tpu_custom_call.1} parent=0
    _
  %s6 = ssub.s32 1, %s4
  %s7 = scalar_select 0, %s6, %s4
  $region1: #{tpu_custom_call.1} parent=0
    #allocation2 [shape = 'u8[65536]{0}', space=vmem, size = 0x10000, scoped, tag = 'input window, operand 0, single buffered']
    #allocation3 [shape = 's32[1]{0}', space=sflag, size = 0x4, scoped, tag = 'scoped memory for tpu_custom_call.1']
    #allocation4 [shape = 's32[1]{0}', space=sflag, size = 0x4, scoped, tag = 'scoped memory for tpu_custom_call.1']
    #allocation5 [shape = 'u8[8192]{0}', space=vmem, size = 0x2000, scoped, tag = 'input window, operand 1, single buffered']
    #allocation6 [shape = 's32[1]{0}', space=sflag, size = 0x4, scoped, tag = 'scoped memory for tpu_custom_call.1']
    #allocation7 [shape = 'u8[8192]{0}', space=vmem, size = 0x2000, scoped, tag = 'input window, operand 2, single buffered']
    #allocation8 [shape = 'u8[65536]{0}', space=vmem, size = 0x10000, scoped, tag = 'output window, operand 0, single buffered']
    %8 = vsyncpa [#allocation3], 0
    %9 = vsyncpa [#allocation6], 0
    %10 = vsyncpa [#allocation4], 0
    // Predicated region
    $region2: #{tpu_custom_call.1} parent=1 // pred_check
      _
    $region3: #{tpu_custom_call.1} parent=1 // pred_check_branch
      %12 = sbr.rel (0) target = $region5
    $region4: #{tpu_custom_call.1} parent=1 // pred_region
      %14 = vsyncadd [#allocation3], 0
      %s15 = sshll.u32 %s0, 4
      %s16 = int_to_ptr.hbm [resolvable:$true] %s15
      %s17 = sshll.u32 [#allocation2], 4
      %s18 = int_to_ptr.vmem [resolvable:$true] %s17
      %23 = dma.hbm_to_vmem [thread:$0]  %s16, 2048, %s18, [#allocation3], 128, 128, 8
    $region5: #{tpu_custom_call.1} parent=1 // pred_fallthru
      _
    // Predicated region
    $region6: #{tpu_custom_call.1} parent=1 // pred_check
      _
    $region7: #{tpu_custom_call.1} parent=1 // pred_check_branch
      %25 = sbr.rel (0) target = $region9
    $region8: #{tpu_custom_call.1} parent=1 // pred_region
      %27 = vsyncadd [#allocation6], 0
      %s28 = sshll.u32 %s1, 4
      %s29 = int_to_ptr.hbm [resolvable:$true] %s28
      %s30 = sshll.u32 [#allocation5], 4
      %s31 = int_to_ptr.vmem [resolvable:$true] %s30
      %36 = dma.hbm_to_vmem [thread:$0]  %s29, 256, %s31, [#allocation6], 128, 128, 8
    $region9: #{tpu_custom_call.1} parent=1 // pred_fallthru
      _
    // Predicated region
    $region10: #{tpu_custom_call.1} parent=1 // pred_check
      _
    $region11: #{tpu_custom_call.1} parent=1 // pred_check_branch
      %38 = sbr.rel (0) target = $region13
    $region12: #{tpu_custom_call.1} parent=1 // pred_region
      %40 = vsyncadd [#allocation6], 0
      %s41 = sshll.u32 %s2, 4
      %s42 = int_to_ptr.hbm [resolvable:$true] %s41
      %s43 = sshll.u32 [#allocation7], 4
      %s44 = int_to_ptr.vmem [resolvable:$true] %s43
      %49 = dma.hbm_to_vmem [thread:$0]  %s42, 256, %s44, [#allocation6], 128, 128, 8
    $region13: #{tpu_custom_call.1} parent=1 // pred_fallthru
      _
    // Predicated region
    $region14: #{tpu_custom_call.1} parent=1 // pred_check
      _
    $region15: #{tpu_custom_call.1} parent=1 // pred_check_branch
      %51 = sbr.rel (0) target = $region17
    $region16: #{tpu_custom_call.1} parent=1 // pred_region
      %53 = dma.done [#allocation3], 2048
    $region17: #{tpu_custom_call.1} parent=1 // pred_fallthru
      _
    // Predicated region
    $region18: #{tpu_custom_call.1} parent=1 // pred_check
      _
    $region19: #{tpu_custom_call.1} parent=1 // pred_check_branch
      %55 = sbr.rel (0) target = $region21
    $region20: #{tpu_custom_call.1} parent=1 // pred_region
      %57 = dma.done [#allocation6], 256
    $region21: #{tpu_custom_call.1} parent=1 // pred_fallthru
      _
    // Predicated region
    $region22: #{tpu_custom_call.1} parent=1 // pred_check
      _
    $region23: #{tpu_custom_call.1} parent=1 // pred_check_branch
      %59 = sbr.rel (0) target = $region25
    $region24: #{tpu_custom_call.1} parent=1 // pred_region
      %61 = dma.done [#allocation6], 256
    $region25: #{tpu_custom_call.1} parent=1 // pred_fallthru
      _
    %v62 = vld [vmem:[#allocation2] sm:$0xff]
    %v63 = vld [vmem:[#allocation2 + $0x8] sm:$0xff]
    %v64 = vld [vmem:[#allocation2 + $0x10] sm:$0xff]
    %v65 = vld [vmem:[#allocation2 + $0x18] sm:$0xff]
    %v66 = vld [vmem:[#allocation2 + $0x20] sm:$0xff]
    %v67 = vld [vmem:[#allocation2 + $0x28] sm:$0xff]
    %v68 = vld [vmem:[#allocation2 + $0x30] sm:$0xff]
    %v69 = vld [vmem:[#allocation2 + $0x38] sm:$0xff]
    %v70 = vld [vmem:[#allocation2 + $0x40] sm:$0xff]
    %v71 = vld [vmem:[#allocation2 + $0x48] sm:$0xff]
    %v72 = vld [vmem:[#allocation2 + $0x50] sm:$0xff]
    %v73 = vld [vmem:[#allocation2 + $0x58] sm:$0xff]
    %v74 = vld [vmem:[#allocation2 + $0x60] sm:$0xff]
    %v75 = vld [vmem:[#allocation2 + $0x68] sm:$0xff]
    %v76 = vld [vmem:[#allocation2 + $0x70] sm:$0xff]
    %v77 = vld [vmem:[#allocation2 + $0x78] sm:$0xff]
    %v78 = vld [vmem:[#allocation7] sm:$0xff]
    %v79 = vld [vmem:[#allocation7 + $0x8] sm:$0xff]
    %vm80 = vcmask 130048
    %v82 = vsel %vm80, %v62, 0
    %v85 = vsel %vm80, %v63, 0
    %87 = vmatpush.msra.mxu0 0.0
    %88 = vmatpush.msra.mxu0 0.0
    %89 = vmatpush.msra.mxu0 0.0
    %90 = vmatpush.msra.mxu0 0.0
    %91 = vmatpush.msra.mxu0 0.0
    %92 = vmatpush.msra.mxu0 0.0
    %93 = vmatpush.msra.mxu0 0.0
    %94 = vmatpush.msra.mxu0 0.0
    %95 = vmatpush.msra.mxu0 0.0
    %96 = vmatpush.msra.mxu0 0.0
    %97 = vmatpush.msra.mxu0 0.0
    %98 = vmatpush.msra.mxu0 0.0
    %99 = vmatpush.msra.mxu0 0.0
    %100 = vmatpush.msra.mxu0 0.0
    %v101 = vand.u32 %v79, 4294901760
    %102 = vmatpush.msra.mxu0 %v101
    %v103 = vand.u32 %v78, 4294901760
    %104 = vmatpush.msra.mxu0 %v103
    %v105 = vand.u32 %v82, 4294901760
    %v106 = vsub.f32 %v82, %v105
    %v107 = vand.u32 %v106, 4294901760
    %v108 = vsub.f32 %v106, %v107
    %v109 = vand.u32 %v108, 4294901760
    %110 = vmatmul.f32.gmra.mxu0 %v109
    %v111 = vpop.f32.mrf.mxu0
    %v112 = vadd.f32 0.0, %v111
    %v113 = vand.u32 %v85, 4294901760
    %v114 = vsub.f32 %v85, %v113
    %v115 = vand.u32 %v114, 4294901760
    %v116 = vsub.f32 %v114, %v115
    %v117 = vand.u32 %v116, 4294901760
    %118 = vmatmul.f32.gmra.mxu0 %v117
    %v119 = vpop.f32.mrf.mxu0
    %v120 = vadd.f32 0.0, %v119
    %121 = vdwg.mxu0
    %122 = vmatpush.msra.mxu0 0.0
    %123 = vmatpush.msra.mxu0 0.0
    %124 = vmatpush.msra.mxu0 0.0
    %125 = vmatpush.msra.mxu0 0.0
    %126 = vmatpush.msra.mxu0 0.0
    %127 = vmatpush.msra.mxu0 0.0
    %128 = vmatpush.msra.mxu0 0.0
    %129 = vmatpush.msra.mxu0 0.0
    %130 = vmatpush.msra.mxu0 0.0
    %131 = vmatpush.msra.mxu0 0.0
    %132 = vmatpush.msra.mxu0 0.0
    %133 = vmatpush.msra.mxu0 0.0
    %134 = vmatpush.msra.mxu0 0.0
    %135 = vmatpush.msra.mxu0 0.0
    %v136 = vand.u32 %v79, 4294901760
    %v137 = vsub.f32 %v79, %v136
    %v138 = vand.u32 %v137, 4294901760
    %v139 = vsub.f32 %v137, %v138
    %v140 = vand.u32 %v139, 4294901760
    %141 = vmatpush.msra.mxu0 %v140
    %v142 = vand.u32 %v78, 4294901760
    %v143 = vsub.f32 %v78, %v142
    %v144 = vand.u32 %v143, 4294901760
    %v145 = vsub.f32 %v143, %v144
    %v146 = vand.u32 %v145, 4294901760
    %147 = vmatpush.msra.mxu0 %v146
    %v148 = vand.u32 %v82, 4294901760
    %149 = vmatmul.f32.gmra.mxu0 %v148
    %v150 = vpop.f32.mrf.mxu0
    %v151 = vadd.f32 %v112, %v150
    %v152 = vand.u32 %v85, 4294901760
    %153 = vmatmul.f32.gmra.mxu0 %v152
    %v154 = vpop.f32.mrf.mxu0
    %v155 = vadd.f32 %v120, %v154
    %156 = vdwg.mxu0
    %157 = vmatpush.msra.mxu0 0.0
    %158 = vmatpush.msra.mxu0 0.0
    %159 = vmatpush.msra.mxu0 0.0
    %160 = vmatpush.msra.mxu0 0.0
    %161 = vmatpush.msra.mxu0 0.0
    %162 = vmatpush.msra.mxu0 0.0
    %163 = vmatpush.msra.mxu0 0.0
    %164 = vmatpush.msra.mxu0 0.0
    %165 = vmatpush.msra.mxu0 0.0
    %166 = vmatpush.msra.mxu0 0.0
    %167 = vmatpush.msra.mxu0 0.0
    %168 = vmatpush.msra.mxu0 0.0
    %169 = vmatpush.msra.mxu0 0.0
    %170 = vmatpush.msra.mxu0 0.0
    %v171 = vand.u32 %v79, 4294901760
    %v172 = vsub.f32 %v79, %v171
    %173 = vmatpush.msra.mxu0 %v172
    %v174 = vand.u32 %v78, 4294901760
    %v175 = vsub.f32 %v78, %v174
    %176 = vmatpush.msra.mxu0 %v175
    %v177 = vand.u32 %v82, 4294901760
    %v178 = vsub.f32 %v82, %v177
    %179 = vmatmul.f32.gmra.mxu0 %v178
    %v180 = vpop.f32.mrf.mxu0
    %v181 = vadd.f32 %v151, %v180
    %v182 = vand.u32 %v85, 4294901760
    %v183 = vsub.f32 %v85, %v182
    %184 = vmatmul.f32.gmra.mxu0 %v183
    %v185 = vpop.f32.mrf.mxu0
    %v186 = vadd.f32 %v155, %v185
    %187 = vdwg.mxu0
    %188 = vmatpush.msra.mxu0 0.0
    %189 = vmatpush.msra.mxu0 0.0
    %190 = vmatpush.msra.mxu0 0.0
    %191 = vmatpush.msra.mxu0 0.0
    %192 = vmatpush.msra.mxu0 0.0
    %193 = vmatpush.msra.mxu0 0.0
    %194 = vmatpush.msra.mxu0 0.0
    %195 = vmatpush.msra.mxu0 0.0
    %196 = vmatpush.msra.mxu0 0.0
    %197 = vmatpush.msra.mxu0 0.0
    %198 = vmatpush.msra.mxu0 0.0
    %199 = vmatpush.msra.mxu0 0.0
    %200 = vmatpush.msra.mxu0 0.0
    %201 = vmatpush.msra.mxu0 0.0
    %v202 = vand.u32 %v79, 4294901760
    %203 = vmatpush.msra.mxu0 %v202
    %v204 = vand.u32 %v78, 4294901760
    %205 = vmatpush.msra.mxu0 %v204
    %v206 = vand.u32 %v82, 4294901760
    %v207 = vsub.f32 %v82, %v206
    %v208 = vand.u32 %v207, 4294901760
    %209 = vmatmul.f32.gmra.mxu0 %v208
    %v210 = vpop.f32.mrf.mxu0
    %v211 = vadd.f32 %v181, %v210
    %v212 = vand.u32 %v85, 4294901760
    %v213 = vsub.f32 %v85, %v212
    %v214 = vand.u32 %v213, 4294901760
    %215 = vmatmul.f32.gmra.mxu0 %v214
    %v216 = vpop.f32.mrf.mxu0
    %v217 = vadd.f32 %v186, %v216
    %218 = vdwg.mxu0
    %219 = vmatpush.msra.mxu0 0.0
    %220 = vmatpush.msra.mxu0 0.0
    %221 = vmatpush.msra.mxu0 0.0
    %222 = vmatpush.msra.mxu0 0.0
    %223 = vmatpush.msra.mxu0 0.0
    %224 = vmatpush.msra.mxu0 0.0
    %225 = vmatpush.msra.mxu0 0.0
    %226 = vmatpush.msra.mxu0 0.0
    %227 = vmatpush.msra.mxu0 0.0
    %228 = vmatpush.msra.mxu0 0.0
    %229 = vmatpush.msra.mxu0 0.0
    %230 = vmatpush.msra.mxu0 0.0
    %231 = vmatpush.msra.mxu0 0.0
    %232 = vmatpush.msra.mxu0 0.0
    %v233 = vand.u32 %v79, 4294901760
    %v234 = vsub.f32 %v79, %v233
    %v235 = vand.u32 %v234, 4294901760
    %236 = vmatpush.msra.mxu0 %v235
    %v237 = vand.u32 %v78, 4294901760
    %v238 = vsub.f32 %v78, %v237
    %v239 = vand.u32 %v238, 4294901760
    %240 = vmatpush.msra.mxu0 %v239
    %v241 = vand.u32 %v82, 4294901760
    %242 = vmatmul.f32.gmra.mxu0 %v241
    %v243 = vpop.f32.mrf.mxu0
    %v244 = vadd.f32 %v211, %v243
    %v245 = vand.u32 %v85, 4294901760
    %246 = vmatmul.f32.gmra.mxu0 %v245
    %v247 = vpop.f32.mrf.mxu0
    %v248 = vadd.f32 %v217, %v247
    %249 = vdwg.mxu0
    %250 = vmatpush.msra.mxu0 0.0
    %251 = vmatpush.msra.mxu0 0.0
    %252 = vmatpush.msra.mxu0 0.0
    %253 = vmatpush.msra.mxu0 0.0
    %254 = vmatpush.msra.mxu0 0.0
    %255 = vmatpush.msra.mxu0 0.0
    %256 = vmatpush.msra.mxu0 0.0
    %257 = vmatpush.msra.mxu0 0.0
    %258 = vmatpush.msra.mxu0 0.0
    %259 = vmatpush.msra.mxu0 0.0
    %260 = vmatpush.msra.mxu0 0.0
    %261 = vmatpush.msra.mxu0 0.0
    %262 = vmatpush.msra.mxu0 0.0
    %263 = vmatpush.msra.mxu0 0.0
    %v264 = vand.u32 %v79, 4294901760
    %265 = vmatpush.msra.mxu0 %v264
    %v266 = vand.u32 %v78, 4294901760
    %267 = vmatpush.msra.mxu0 %v266
    %v268 = vand.u32 %v82, 4294901760
    %269 = vmatmul.f32.gmra.mxu0 %v268
    %v270 = vpop.f32.mrf.mxu0
    %v271 = vadd.f32 %v244, %v270
    %v272 = vand.u32 %v85, 4294901760
    %273 = vmatmul.f32.gmra.mxu0 %v272
    %v274 = vpop.f32.mrf.mxu0
    %v275 = vadd.f32 %v248, %v274
    %276 = vdwg.mxu0
    %v278 = vsel %vm80, %v64, 0
    %v281 = vsel %vm80, %v65, 0
    %283 = vmatpush.msra.mxu0 0.0
    %284 = vmatpush.msra.mxu0 0.0
    %285 = vmatpush.msra.mxu0 0.0
    %286 = vmatpush.msra.mxu0 0.0
    %287 = vmatpush.msra.mxu0 0.0
    %288 = vmatpush.msra.mxu0 0.0
    %289 = vmatpush.msra.mxu0 0.0
    %290 = vmatpush.msra.mxu0 0.0
    %291 = vmatpush.msra.mxu0 0.0
    %292 = vmatpush.msra.mxu0 0.0
    %293 = vmatpush.msra.mxu0 0.0
    %294 = vmatpush.msra.mxu0 0.0
    %295 = vmatpush.msra.mxu0 0.0
    %296 = vmatpush.msra.mxu0 0.0
    %v297 = vand.u32 %v79, 4294901760
    %298 = vmatpush.msra.mxu0 %v297
    %v299 = vand.u32 %v78, 4294901760
    %300 = vmatpush.msra.mxu0 %v299
    %v301 = vand.u32 %v278, 4294901760
    %v302 = vsub.f32 %v278, %v301
    %v303 = vand.u32 %v302, 4294901760
    %v304 = vsub.f32 %v302, %v303
    %v305 = vand.u32 %v304, 4294901760
    %306 = vmatmul.f32.gmra.mxu0 %v305
    %v307 = vpop.f32.mrf.mxu0
    %v308 = vadd.f32 0.0, %v307
    %v309 = vand.u32 %v281, 4294901760
    %v310 = vsub.f32 %v281, %v309
    %v311 = vand.u32 %v310, 4294901760
    %v312 = vsub.f32 %v310, %v311
    %v313 = vand.u32 %v312, 4294901760
    %314 = vmatmul.f32.gmra.mxu0 %v313
    %v315 = vpop.f32.mrf.mxu0
    %v316 = vadd.f32 0.0, %v315
    %317 = vdwg.mxu0
    %318 = vmatpush.msra.mxu0 0.0
    %319 = vmatpush.msra.mxu0 0.0
    %320 = vmatpush.msra.mxu0 0.0
    %321 = vmatpush.msra.mxu0 0.0
    %322 = vmatpush.msra.mxu0 0.0
    %323 = vmatpush.msra.mxu0 0.0
    %324 = vmatpush.msra.mxu0 0.0
    %325 = vmatpush.msra.mxu0 0.0
    %326 = vmatpush.msra.mxu0 0.0
    %327 = vmatpush.msra.mxu0 0.0
    %328 = vmatpush.msra.mxu0 0.0
    %329 = vmatpush.msra.mxu0 0.0
    %330 = vmatpush.msra.mxu0 0.0
    %331 = vmatpush.msra.mxu0 0.0
    %v332 = vand.u32 %v79, 4294901760
    %v333 = vsub.f32 %v79, %v332
    %v334 = vand.u32 %v333, 4294901760
    %v335 = vsub.f32 %v333, %v334
    %v336 = vand.u32 %v335, 4294901760
    %337 = vmatpush.msra.mxu0 %v336
    %v338 = vand.u32 %v78, 4294901760
    %v339 = vsub.f32 %v78, %v338
    %v340 = vand.u32 %v339, 4294901760
    %v341 = vsub.f32 %v339, %v340
    %v342 = vand.u32 %v341, 4294901760
    %343 = vmatpush.msra.mxu0 %v342
    %v344 = vand.u32 %v278, 4294901760
    %345 = vmatmul.f32.gmra.mxu0 %v344
    %v346 = vpop.f32.mrf.mxu0
    %v347 = vadd.f32 %v308, %v346
    %v348 = vand.u32 %v281, 4294901760
    %349 = vmatmul.f32.gmra.mxu0 %v348
    %v350 = vpop.f32.mrf.mxu0
    %v351 = vadd.f32 %v316, %v350
    %352 = vdwg.mxu0
    %353 = vmatpush.msra.mxu0 0.0
    %354 = vmatpush.msra.mxu0 0.0
    %355 = vmatpush.msra.mxu0 0.0
    %356 = vmatpush.msra.mxu0 0.0
    %357 = vmatpush.msra.mxu0 0.0
    %358 = vmatpush.msra.mxu0 0.0
    %359 = vmatpush.msra.mxu0 0.0
    %360 = vmatpush.msra.mxu0 0.0
    %361 = vmatpush.msra.mxu0 0.0
    %362 = vmatpush.msra.mxu0 0.0
    %363 = vmatpush.msra.mxu0 0.0
    %364 = vmatpush.msra.mxu0 0.0
    %365 = vmatpush.msra.mxu0 0.0
    %366 = vmatpush.msra.mxu0 0.0
    %v367 = vand.u32 %v79, 4294901760
    %v368 = vsub.f32 %v79, %v367
    %369 = vmatpush.msra.mxu0 %v368
    %v370 = vand.u32 %v78, 4294901760
    %v371 = vsub.f32 %v78, %v370
    %372 = vmatpush.msra.mxu0 %v371
    %v373 = vand.u32 %v278, 4294901760
    %v374 = vsub.f32 %v278, %v373
    %375 = vmatmul.f32.gmra.mxu0 %v374
    %v376 = vpop.f32.mrf.mxu0
    %v377 = vadd.f32 %v347, %v376
    %v378 = vand.u32 %v281, 4294901760
    %v379 = vsub.f32 %v281, %v378
    %380 = vmatmul.f32.gmra.mxu0 %v379
    %v381 = vpop.f32.mrf.mxu0
    %v382 = vadd.f32 %v351, %v381
    %383 = vdwg.mxu0
    %384 = vmatpush.msra.mxu0 0.0
    %385 = vmatpush.msra.mxu0 0.0
    %386 = vmatpush.msra.mxu0 0.0
    %387 = vmatpush.msra.mxu0 0.0
    %388 = vmatpush.msra.mxu0 0.0
    %389 = vmatpush.msra.mxu0 0.0
    %390 = vmatpush.msra.mxu0 0.0
    %391 = vmatpush.msra.mxu0 0.0
    %392 = vmatpush.msra.mxu0 0.0
    %393 = vmatpush.msra.mxu0 0.0
    %394 = vmatpush.msra.mxu0 0.0
    %395 = vmatpush.msra.mxu0 0.0
    %396 = vmatpush.msra.mxu0 0.0
    %397 = vmatpush.msra.mxu0 0.0
    %v398 = vand.u32 %v79, 4294901760
    %399 = vmatpush.msra.mxu0 %v398
    %v400 = vand.u32 %v78, 4294901760
    %401 = vmatpush.msra.mxu0 %v400
    %v402 = vand.u32 %v278, 4294901760
    %v403 = vsub.f32 %v278, %v402
    %v404 = vand.u32 %v403, 4294901760
    %405 = vmatmul.f32.gmra.mxu0 %v404
    %v406 = vpop.f32.mrf.mxu0
    %v407 = vadd.f32 %v377, %v406
    %v408 = vand.u32 %v281, 4294901760
    %v409 = vsub.f32 %v281, %v408
    %v410 = vand.u32 %v409, 4294901760
    %411 = vmatmul.f32.gmra.mxu0 %v410
    %v412 = vpop.f32.mrf.mxu0
    %v413 = vadd.f32 %v382, %v412
    %414 = vdwg.mxu0
    %415 = vmatpush.msra.mxu0 0.0
    %416 = vmatpush.msra.mxu0 0.0
    %417 = vmatpush.msra.mxu0 0.0
    %418 = vmatpush.msra.mxu0 0.0
    %419 = vmatpush.msra.mxu0 0.0
    %420 = vmatpush.msra.mxu0 0.0
    %421 = vmatpush.msra.mxu0 0.0
    %422 = vmatpush.msra.mxu0 0.0
    %423 = vmatpush.msra.mxu0 0.0
    %424 = vmatpush.msra.mxu0 0.0
    %425 = vmatpush.msra.mxu0 0.0
    %426 = vmatpush.msra.mxu0 0.0
    %427 = vmatpush.msra.mxu0 0.0
    %428 = vmatpush.msra.mxu0 0.0
    %v429 = vand.u32 %v79, 4294901760
    %v430 = vsub.f32 %v79, %v429
    %v431 = vand.u32 %v430, 4294901760
    %432 = vmatpush.msra.mxu0 %v431
    %v433 = vand.u32 %v78, 4294901760
    %v434 = vsub.f32 %v78, %v433
    %v435 = vand.u32 %v434, 4294901760
    %436 = vmatpush.msra.mxu0 %v435
    %v437 = vand.u32 %v278, 4294901760
    %438 = vmatmul.f32.gmra.mxu0 %v437
    %v439 = vpop.f32.mrf.mxu0
    %v440 = vadd.f32 %v407, %v439
    %v441 = vand.u32 %v281, 4294901760
    %442 = vmatmul.f32.gmra.mxu0 %v441
    %v443 = vpop.f32.mrf.mxu0
    %v444 = vadd.f32 %v413, %v443
    %445 = vdwg.mxu0
    %446 = vmatpush.msra.mxu0 0.0
    %447 = vmatpush.msra.mxu0 0.0
    %448 = vmatpush.msra.mxu0 0.0
    %449 = vmatpush.msra.mxu0 0.0
    %450 = vmatpush.msra.mxu0 0.0
    %451 = vmatpush.msra.mxu0 0.0
    %452 = vmatpush.msra.mxu0 0.0
    %453 = vmatpush.msra.mxu0 0.0
    %454 = vmatpush.msra.mxu0 0.0
    %455 = vmatpush.msra.mxu0 0.0
    %456 = vmatpush.msra.mxu0 0.0
    %457 = vmatpush.msra.mxu0 0.0
    %458 = vmatpush.msra.mxu0 0.0
    %459 = vmatpush.msra.mxu0 0.0
    %v460 = vand.u32 %v79, 4294901760
    %461 = vmatpush.msra.mxu0 %v460
    %v462 = vand.u32 %v78, 4294901760
    %463 = vmatpush.msra.mxu0 %v462
    %v464 = vand.u32 %v278, 4294901760
    %465 = vmatmul.f32.gmra.mxu0 %v464
    %v466 = vpop.f32.mrf.mxu0
    %v467 = vadd.f32 %v440, %v466
    %v468 = vand.u32 %v281, 4294901760
    %469 = vmatmul.f32.gmra.mxu0 %v468
    %v470 = vpop.f32.mrf.mxu0
    %v471 = vadd.f32 %v444, %v470
    %472 = vdwg.mxu0
    %v474 = vsel %vm80, %v66, 0
    %v477 = vsel %vm80, %v67, 0
    %479 = vmatpush.msra.mxu0 0.0
    %480 = vmatpush.msra.mxu0 0.0
    %481 = vmatpush.msra.mxu0 0.0
    %482 = vmatpush.msra.mxu0 0.0
    %483 = vmatpush.msra.mxu0 0.0
    %484 = vmatpush.msra.mxu0 0.0
    %485 = vmatpush.msra.mxu0 0.0
    %486 = vmatpush.msra.mxu0 0.0
    %487 = vmatpush.msra.mxu0 0.0
    %488 = vmatpush.msra.mxu0 0.0
    %489 = vmatpush.msra.mxu0 0.0
    %490 = vmatpush.msra.mxu0 0.0
    %491 = vmatpush.msra.mxu0 0.0
    %492 = vmatpush.msra.mxu0 0.0
    %v493 = vand.u32 %v79, 4294901760
    %494 = vmatpush.msra.mxu0 %v493
    %v495 = vand.u32 %v78, 4294901760
    %496 = vmatpush.msra.mxu0 %v495
    %v497 = vand.u32 %v474, 4294901760
    %v498 = vsub.f32 %v474, %v497
    %v499 = vand.u32 %v498, 4294901760
    %v500 = vsub.f32 %v498, %v499
    %v501 = vand.u32 %v500, 4294901760
    %502 = vmatmul.f32.gmra.mxu0 %v501
    %v503 = vpop.f32.mrf.mxu0
    %v504 = vadd.f32 0.0, %v503
    %v505 = vand.u32 %v477, 4294901760
    %v506 = vsub.f32 %v477, %v505
    %v507 = vand.u32 %v506, 4294901760
    %v508 = vsub.f32 %v506, %v507
    %v509 = vand.u32 %v508, 4294901760
    %510 = vmatmul.f32.gmra.mxu0 %v509
    %v511 = vpop.f32.mrf.mxu0
    %v512 = vadd.f32 0.0, %v511
    %513 = vdwg.mxu0
    %514 = vmatpush.msra.mxu0 0.0
    %515 = vmatpush.msra.mxu0 0.0
    %516 = vmatpush.msra.mxu0 0.0
    %517 = vmatpush.msra.mxu0 0.0
    %518 = vmatpush.msra.mxu0 0.0
    %519 = vmatpush.msra.mxu0 0.0
    %520 = vmatpush.msra.mxu0 0.0
    %521 = vmatpush.msra.mxu0 0.0
    %522 = vmatpush.msra.mxu0 0.0
    %523 = vmatpush.msra.mxu0 0.0
    %524 = vmatpush.msra.mxu0 0.0
    %525 = vmatpush.msra.mxu0 0.0
    %526 = vmatpush.msra.mxu0 0.0
    %527 = vmatpush.msra.mxu0 0.0
    %v528 = vand.u32 %v79, 4294901760
    %v529 = vsub.f32 %v79, %v528
    %v530 = vand.u32 %v529, 4294901760
    %v531 = vsub.f32 %v529, %v530
    %v532 = vand.u32 %v531, 4294901760
    %533 = vmatpush.msra.mxu0 %v532
    %v534 = vand.u32 %v78, 4294901760
    %v535 = vsub.f32 %v78, %v534
    %v536 = vand.u32 %v535, 4294901760
    %v537 = vsub.f32 %v535, %v536
    %v538 = vand.u32 %v537, 4294901760
    %539 = vmatpush.msra.mxu0 %v538
    %v540 = vand.u32 %v474, 4294901760
    %541 = vmatmul.f32.gmra.mxu0 %v540
    %v542 = vpop.f32.mrf.mxu0
    %v543 = vadd.f32 %v504, %v542
    %v544 = vand.u32 %v477, 4294901760
    %545 = vmatmul.f32.gmra.mxu0 %v544
    %v546 = vpop.f32.mrf.mxu0
    %v547 = vadd.f32 %v512, %v546
    %548 = vdwg.mxu0
    %549 = vmatpush.msra.mxu0 0.0
    %550 = vmatpush.msra.mxu0 0.0
    %551 = vmatpush.msra.mxu0 0.0
    %552 = vmatpush.msra.mxu0 0.0
    %553 = vmatpush.msra.mxu0 0.0
    %554 = vmatpush.msra.mxu0 0.0
    %555 = vmatpush.msra.mxu0 0.0
    %556 = vmatpush.msra.mxu0 0.0
    %557 = vmatpush.msra.mxu0 0.0
    %558 = vmatpush.msra.mxu0 0.0
    %559 = vmatpush.msra.mxu0 0.0
    %560 = vmatpush.msra.mxu0 0.0
    %561 = vmatpush.msra.mxu0 0.0
    %562 = vmatpush.msra.mxu0 0.0
    %v563 = vand.u32 %v79, 4294901760
    %v564 = vsub.f32 %v79, %v563
    %565 = vmatpush.msra.mxu0 %v564
    %v566 = vand.u32 %v78, 4294901760
    %v567 = vsub.f32 %v78, %v566
    %568 = vmatpush.msra.mxu0 %v567
    %v569 = vand.u32 %v474, 4294901760
    %v570 = vsub.f32 %v474, %v569
    %571 = vmatmul.f32.gmra.mxu0 %v570
    %v572 = vpop.f32.mrf.mxu0
    %v573 = vadd.f32 %v543, %v572
    %v574 = vand.u32 %v477, 4294901760
    %v575 = vsub.f32 %v477, %v574
    %576 = vmatmul.f32.gmra.mxu0 %v575
    %v577 = vpop.f32.mrf.mxu0
    %v578 = vadd.f32 %v547, %v577
    %579 = vdwg.mxu0
    %580 = vmatpush.msra.mxu0 0.0
    %581 = vmatpush.msra.mxu0 0.0
    %582 = vmatpush.msra.mxu0 0.0
    %583 = vmatpush.msra.mxu0 0.0
    %584 = vmatpush.msra.mxu0 0.0
    %585 = vmatpush.msra.mxu0 0.0
    %586 = vmatpush.msra.mxu0 0.0
    %587 = vmatpush.msra.mxu0 0.0
    %588 = vmatpush.msra.mxu0 0.0
    %589 = vmatpush.msra.mxu0 0.0
    %590 = vmatpush.msra.mxu0 0.0
    %591 = vmatpush.msra.mxu0 0.0
    %592 = vmatpush.msra.mxu0 0.0
    %593 = vmatpush.msra.mxu0 0.0
    %v594 = vand.u32 %v79, 4294901760
    %595 = vmatpush.msra.mxu0 %v594
    %v596 = vand.u32 %v78, 4294901760
    %597 = vmatpush.msra.mxu0 %v596
    %v598 = vand.u32 %v474, 4294901760
    %v599 = vsub.f32 %v474, %v598
    %v600 = vand.u32 %v599, 4294901760
    %601 = vmatmul.f32.gmra.mxu0 %v600
    %v602 = vpop.f32.mrf.mxu0
    %v603 = vadd.f32 %v573, %v602
    %v604 = vand.u32 %v477, 4294901760
    %v605 = vsub.f32 %v477, %v604
    %v606 = vand.u32 %v605, 4294901760
    %607 = vmatmul.f32.gmra.mxu0 %v606
    %v608 = vpop.f32.mrf.mxu0
    %v609 = vadd.f32 %v578, %v608
    %610 = vdwg.mxu0
    %611 = vmatpush.msra.mxu0 0.0
    %612 = vmatpush.msra.mxu0 0.0
    %613 = vmatpush.msra.mxu0 0.0
    %614 = vmatpush.msra.mxu0 0.0
    %615 = vmatpush.msra.mxu0 0.0
    %616 = vmatpush.msra.mxu0 0.0
    %617 = vmatpush.msra.mxu0 0.0
    %618 = vmatpush.msra.mxu0 0.0
    %619 = vmatpush.msra.mxu0 0.0
    %620 = vmatpush.msra.mxu0 0.0
    %621 = vmatpush.msra.mxu0 0.0
    %622 = vmatpush.msra.mxu0 0.0
    %623 = vmatpush.msra.mxu0 0.0
    %624 = vmatpush.msra.mxu0 0.0
    %v625 = vand.u32 %v79, 4294901760
    %v626 = vsub.f32 %v79, %v625
    %v627 = vand.u32 %v626, 4294901760
    %628 = vmatpush.msra.mxu0 %v627
    %v629 = vand.u32 %v78, 4294901760
    %v630 = vsub.f32 %v78, %v629
    %v631 = vand.u32 %v630, 4294901760
    %632 = vmatpush.msra.mxu0 %v631
    %v633 = vand.u32 %v474, 4294901760
    %634 = vmatmul.f32.gmra.mxu0 %v633
    %v635 = vpop.f32.mrf.mxu0
    %v636 = vadd.f32 %v603, %v635
    %v637 = vand.u32 %v477, 4294901760
    %638 = vmatmul.f32.gmra.mxu0 %v637
    %v639 = vpop.f32.mrf.mxu0
    %v640 = vadd.f32 %v609, %v639
    %641 = vdwg.mxu0
    %642 = vmatpush.msra.mxu0 0.0
    %643 = vmatpush.msra.mxu0 0.0
    %644 = vmatpush.msra.mxu0 0.0
    %645 = vmatpush.msra.mxu0 0.0
    %646 = vmatpush.msra.mxu0 0.0
    %647 = vmatpush.msra.mxu0 0.0
    %648 = vmatpush.msra.mxu0 0.0
    %649 = vmatpush.msra.mxu0 0.0
    %650 = vmatpush.msra.mxu0 0.0
    %651 = vmatpush.msra.mxu0 0.0
    %652 = vmatpush.msra.mxu0 0.0
    %653 = vmatpush.msra.mxu0 0.0
    %654 = vmatpush.msra.mxu0 0.0
    %655 = vmatpush.msra.mxu0 0.0
    %v656 = vand.u32 %v79, 4294901760
    %657 = vmatpush.msra.mxu0 %v656
    %v658 = vand.u32 %v78, 4294901760
    %659 = vmatpush.msra.mxu0 %v658
    %v660 = vand.u32 %v474, 4294901760
    %661 = vmatmul.f32.gmra.mxu0 %v660
    %v662 = vpop.f32.mrf.mxu0
    %v663 = vadd.f32 %v636, %v662
    %v664 = vand.u32 %v477, 4294901760
    %665 = vmatmul.f32.gmra.mxu0 %v664
    %v666 = vpop.f32.mrf.mxu0
    %v667 = vadd.f32 %v640, %v666
    %668 = vdwg.mxu0
    %v670 = vsel %vm80, %v68, 0
    %v673 = vsel %vm80, %v69, 0
    %675 = vmatpush.msra.mxu0 0.0
    %676 = vmatpush.msra.mxu0 0.0
    %677 = vmatpush.msra.mxu0 0.0
    %678 = vmatpush.msra.mxu0 0.0
    %679 = vmatpush.msra.mxu0 0.0
    %680 = vmatpush.msra.mxu0 0.0
    %681 = vmatpush.msra.mxu0 0.0
    %682 = vmatpush.msra.mxu0 0.0
    %683 = vmatpush.msra.mxu0 0.0
    %684 = vmatpush.msra.mxu0 0.0
    %685 = vmatpush.msra.mxu0 0.0
    %686 = vmatpush.msra.mxu0 0.0
    %687 = vmatpush.msra.mxu0 0.0
    %688 = vmatpush.msra.mxu0 0.0
    %v689 = vand.u32 %v79, 4294901760
    %690 = vmatpush.msra.mxu0 %v689
    %v691 = vand.u32 %v78, 4294901760
    %692 = vmatpush.msra.mxu0 %v691
    %v693 = vand.u32 %v670, 4294901760
    %v694 = vsub.f32 %v670, %v693
    %v695 = vand.u32 %v694, 4294901760
    %v696 = vsub.f32 %v694, %v695
    %v697 = vand.u32 %v696, 4294901760
    %698 = vmatmul.f32.gmra.mxu0 %v697
    %v699 = vpop.f32.mrf.mxu0
    %v700 = vadd.f32 0.0, %v699
    %v701 = vand.u32 %v673, 4294901760
    %v702 = vsub.f32 %v673, %v701
    %v703 = vand.u32 %v702, 4294901760
    %v704 = vsub.f32 %v702, %v703
    %v705 = vand.u32 %v704, 4294901760
    %706 = vmatmul.f32.gmra.mxu0 %v705
    %v707 = vpop.f32.mrf.mxu0
    %v708 = vadd.f32 0.0, %v707
    %709 = vdwg.mxu0
    %710 = vmatpush.msra.mxu0 0.0
    %711 = vmatpush.msra.mxu0 0.0
    %712 = vmatpush.msra.mxu0 0.0
    %713 = vmatpush.msra.mxu0 0.0
    %714 = vmatpush.msra.mxu0 0.0
    %715 = vmatpush.msra.mxu0 0.0
    %716 = vmatpush.msra.mxu0 0.0
    %717 = vmatpush.msra.mxu0 0.0
    %718 = vmatpush.msra.mxu0 0.0
    %719 = vmatpush.msra.mxu0 0.0
    %720 = vmatpush.msra.mxu0 0.0
    %721 = vmatpush.msra.mxu0 0.0
    %722 = vmatpush.msra.mxu0 0.0
    %723 = vmatpush.msra.mxu0 0.0
    %v724 = vand.u32 %v79, 4294901760
    %v725 = vsub.f32 %v79, %v724
    %v726 = vand.u32 %v725, 4294901760
    %v727 = vsub.f32 %v725, %v726
    %v728 = vand.u32 %v727, 4294901760
    %729 = vmatpush.msra.mxu0 %v728
    %v730 = vand.u32 %v78, 4294901760
    %v731 = vsub.f32 %v78, %v730
    %v732 = vand.u32 %v731, 4294901760
    %v733 = vsub.f32 %v731, %v732
    %v734 = vand.u32 %v733, 4294901760
    %735 = vmatpush.msra.mxu0 %v734
    %v736 = vand.u32 %v670, 4294901760
    %737 = vmatmul.f32.gmra.mxu0 %v736
    %v738 = vpop.f32.mrf.mxu0
    %v739 = vadd.f32 %v700, %v738
    %v740 = vand.u32 %v673, 4294901760
    %741 = vmatmul.f32.gmra.mxu0 %v740
    %v742 = vpop.f32.mrf.mxu0
    %v743 = vadd.f32 %v708, %v742
    %744 = vdwg.mxu0
    %745 = vmatpush.msra.mxu0 0.0
    %746 = vmatpush.msra.mxu0 0.0
    %747 = vmatpush.msra.mxu0 0.0
    %748 = vmatpush.msra.mxu0 0.0
    %749 = vmatpush.msra.mxu0 0.0
    %750 = vmatpush.msra.mxu0 0.0
    %751 = vmatpush.msra.mxu0 0.0
    %752 = vmatpush.msra.mxu0 0.0
    %753 = vmatpush.msra.mxu0 0.0
    %754 = vmatpush.msra.mxu0 0.0
    %755 = vmatpush.msra.mxu0 0.0
    %756 = vmatpush.msra.mxu0 0.0
    %757 = vmatpush.msra.mxu0 0.0
    %758 = vmatpush.msra.mxu0 0.0
    %v759 = vand.u32 %v79, 4294901760
    %v760 = vsub.f32 %v79, %v759
    %761 = vmatpush.msra.mxu0 %v760
    %v762 = vand.u32 %v78, 4294901760
    %v763 = vsub.f32 %v78, %v762
    %764 = vmatpush.msra.mxu0 %v763
    %v765 = vand.u32 %v670, 4294901760
    %v766 = vsub.f32 %v670, %v765
    %767 = vmatmul.f32.gmra.mxu0 %v766
    %v768 = vpop.f32.mrf.mxu0
    %v769 = vadd.f32 %v739, %v768
    %v770 = vand.u32 %v673, 4294901760
    %v771 = vsub.f32 %v673, %v770
    %772 = vmatmul.f32.gmra.mxu0 %v771
    %v773 = vpop.f32.mrf.mxu0
    %v774 = vadd.f32 %v743, %v773
    %775 = vdwg.mxu0
    %776 = vmatpush.msra.mxu0 0.0
    %777 = vmatpush.msra.mxu0 0.0
    %778 = vmatpush.msra.mxu0 0.0
    %779 = vmatpush.msra.mxu0 0.0
    %780 = vmatpush.msra.mxu0 0.0
    %781 = vmatpush.msra.mxu0 0.0
    %782 = vmatpush.msra.mxu0 0.0
    %783 = vmatpush.msra.mxu0 0.0
    %784 = vmatpush.msra.mxu0 0.0
    %785 = vmatpush.msra.mxu0 0.0
    %786 = vmatpush.msra.mxu0 0.0
    %787 = vmatpush.msra.mxu0 0.0
    %788 = vmatpush.msra.mxu0 0.0
    %789 = vmatpush.msra.mxu0 0.0
    %v790 = vand.u32 %v79, 4294901760
    %791 = vmatpush.msra.mxu0 %v790
    %v792 = vand.u32 %v78, 4294901760
    %793 = vmatpush.msra.mxu0 %v792
    %v794 = vand.u32 %v670, 4294901760
    %v795 = vsub.f32 %v670, %v794
    %v796 = vand.u32 %v795, 4294901760
    %797 = vmatmul.f32.gmra.mxu0 %v796
    %v798 = vpop.f32.mrf.mxu0
    %v799 = vadd.f32 %v769, %v798
    %v800 = vand.u32 %v673, 4294901760
    %v801 = vsub.f32 %v673, %v800
    %v802 = vand.u32 %v801, 4294901760
    %803 = vmatmul.f32.gmra.mxu0 %v802
    %v804 = vpop.f32.mrf.mxu0
    %v805 = vadd.f32 %v774, %v804
    %806 = vdwg.mxu0
    %807 = vmatpush.msra.mxu0 0.0
    %808 = vmatpush.msra.mxu0 0.0
    %809 = vmatpush.msra.mxu0 0.0
    %810 = vmatpush.msra.mxu0 0.0
    %811 = vmatpush.msra.mxu0 0.0
    %812 = vmatpush.msra.mxu0 0.0
    %813 = vmatpush.msra.mxu0 0.0
    %814 = vmatpush.msra.mxu0 0.0
    %815 = vmatpush.msra.mxu0 0.0
    %816 = vmatpush.msra.mxu0 0.0
    %817 = vmatpush.msra.mxu0 0.0
    %818 = vmatpush.msra.mxu0 0.0
    %819 = vmatpush.msra.mxu0 0.0
    %820 = vmatpush.msra.mxu0 0.0
    %v821 = vand.u32 %v79, 4294901760
    %v822 = vsub.f32 %v79, %v821
    %v823 = vand.u32 %v822, 4294901760
    %824 = vmatpush.msra.mxu0 %v823
    %v825 = vand.u32 %v78, 4294901760
    %v826 = vsub.f32 %v78, %v825
    %v827 = vand.u32 %v826, 4294901760
    %828 = vmatpush.msra.mxu0 %v827
    %v829 = vand.u32 %v670, 4294901760
    %830 = vmatmul.f32.gmra.mxu0 %v829
    %v831 = vpop.f32.mrf.mxu0
    %v832 = vadd.f32 %v799, %v831
    %v833 = vand.u32 %v673, 4294901760
    %834 = vmatmul.f32.gmra.mxu0 %v833
    %v835 = vpop.f32.mrf.mxu0
    %v836 = vadd.f32 %v805, %v835
    %837 = vdwg.mxu0
    %838 = vmatpush.msra.mxu0 0.0
    %839 = vmatpush.msra.mxu0 0.0
    %840 = vmatpush.msra.mxu0 0.0
    %841 = vmatpush.msra.mxu0 0.0
    %842 = vmatpush.msra.mxu0 0.0
    %843 = vmatpush.msra.mxu0 0.0
    %844 = vmatpush.msra.mxu0 0.0
    %845 = vmatpush.msra.mxu0 0.0
    %846 = vmatpush.msra.mxu0 0.0
    %847 = vmatpush.msra.mxu0 0.0
    %848 = vmatpush.msra.mxu0 0.0
    %849 = vmatpush.msra.mxu0 0.0
    %850 = vmatpush.msra.mxu0 0.0
    %851 = vmatpush.msra.mxu0 0.0
    %v852 = vand.u32 %v79, 4294901760
    %853 = vmatpush.msra.mxu0 %v852
    %v854 = vand.u32 %v78, 4294901760
    %855 = vmatpush.msra.mxu0 %v854
    %v856 = vand.u32 %v670, 4294901760
    %857 = vmatmul.f32.gmra.mxu0 %v856
    %v858 = vpop.f32.mrf.mxu0
    %v859 = vadd.f32 %v832, %v858
    %v860 = vand.u32 %v673, 4294901760
    %861 = vmatmul.f32.gmra.mxu0 %v860
    %v862 = vpop.f32.mrf.mxu0
    %v863 = vadd.f32 %v836, %v862
    %864 = vdwg.mxu0
    %v866 = vsel %vm80, %v70, 0
    %v869 = vsel %vm80, %v71, 0
    %871 = vmatpush.msra.mxu0 0.0
    %872 = vmatpush.msra.mxu0 0.0
    %873 = vmatpush.msra.mxu0 0.0
    %874 = vmatpush.msra.mxu0 0.0
    %875 = vmatpush.msra.mxu0 0.0
    %876 = vmatpush.msra.mxu0 0.0
    %877 = vmatpush.msra.mxu0 0.0
    %878 = vmatpush.msra.mxu0 0.0
    %879 = vmatpush.msra.mxu0 0.0
    %880 = vmatpush.msra.mxu0 0.0
    %881 = vmatpush.msra.mxu0 0.0
    %882 = vmatpush.msra.mxu0 0.0
    %883 = vmatpush.msra.mxu0 0.0
    %884 = vmatpush.msra.mxu0 0.0
    %v885 = vand.u32 %v79, 4294901760
    %886 = vmatpush.msra.mxu0 %v885
    %v887 = vand.u32 %v78, 4294901760
    %888 = vmatpush.msra.mxu0 %v887
    %v889 = vand.u32 %v866, 4294901760
    %v890 = vsub.f32 %v866, %v889
    %v891 = vand.u32 %v890, 4294901760
    %v892 = vsub.f32 %v890, %v891
    %v893 = vand.u32 %v892, 4294901760
    %894 = vmatmul.f32.gmra.mxu0 %v893
    %v895 = vpop.f32.mrf.mxu0
    %v896 = vadd.f32 0.0, %v895
    %v897 = vand.u32 %v869, 4294901760
    %v898 = vsub.f32 %v869, %v897
    %v899 = vand.u32 %v898, 4294901760
    %v900 = vsub.f32 %v898, %v899
    %v901 = vand.u32 %v900, 4294901760
    %902 = vmatmul.f32.gmra.mxu0 %v901
    %v903 = vpop.f32.mrf.mxu0
    %v904 = vadd.f32 0.0, %v903
    %905 = vdwg.mxu0
    %906 = vmatpush.msra.mxu0 0.0
    %907 = vmatpush.msra.mxu0 0.0
    %908 = vmatpush.msra.mxu0 0.0
    %909 = vmatpush.msra.mxu0 0.0
    %910 = vmatpush.msra.mxu0 0.0
    %911 = vmatpush.msra.mxu0 0.0
    %912 = vmatpush.msra.mxu0 0.0
    %913 = vmatpush.msra.mxu0 0.0
    %914 = vmatpush.msra.mxu0 0.0
    %915 = vmatpush.msra.mxu0 0.0
    %916 = vmatpush.msra.mxu0 0.0
    %917 = vmatpush.msra.mxu0 0.0
    %918 = vmatpush.msra.mxu0 0.0
    %919 = vmatpush.msra.mxu0 0.0
    %v920 = vand.u32 %v79, 4294901760
    %v921 = vsub.f32 %v79, %v920
    %v922 = vand.u32 %v921, 4294901760
    %v923 = vsub.f32 %v921, %v922
    %v924 = vand.u32 %v923, 4294901760
    %925 = vmatpush.msra.mxu0 %v924
    %v926 = vand.u32 %v78, 4294901760
    %v927 = vsub.f32 %v78, %v926
    %v928 = vand.u32 %v927, 4294901760
    %v929 = vsub.f32 %v927, %v928
    %v930 = vand.u32 %v929, 4294901760
    %931 = vmatpush.msra.mxu0 %v930
    %v932 = vand.u32 %v866, 4294901760
    %933 = vmatmul.f32.gmra.mxu0 %v932
    %v934 = vpop.f32.mrf.mxu0
    %v935 = vadd.f32 %v896, %v934
    %v936 = vand.u32 %v869, 4294901760
    %937 = vmatmul.f32.gmra.mxu0 %v936
    %v938 = vpop.f32.mrf.mxu0
    %v939 = vadd.f32 %v904, %v938
    %940 = vdwg.mxu0
    %941 = vmatpush.msra.mxu0 0.0
    %942 = vmatpush.msra.mxu0 0.0
    %943 = vmatpush.msra.mxu0 0.0
    %944 = vmatpush.msra.mxu0 0.0
    %945 = vmatpush.msra.mxu0 0.0
    %946 = vmatpush.msra.mxu0 0.0
    %947 = vmatpush.msra.mxu0 0.0
    %948 = vmatpush.msra.mxu0 0.0
    %949 = vmatpush.msra.mxu0 0.0
    %950 = vmatpush.msra.mxu0 0.0
    %951 = vmatpush.msra.mxu0 0.0
    %952 = vmatpush.msra.mxu0 0.0
    %953 = vmatpush.msra.mxu0 0.0
    %954 = vmatpush.msra.mxu0 0.0
    %v955 = vand.u32 %v79, 4294901760
    %v956 = vsub.f32 %v79, %v955
    %957 = vmatpush.msra.mxu0 %v956
    %v958 = vand.u32 %v78, 4294901760
    %v959 = vsub.f32 %v78, %v958
    %960 = vmatpush.msra.mxu0 %v959
    %v961 = vand.u32 %v866, 4294901760
    %v962 = vsub.f32 %v866, %v961
    %963 = vmatmul.f32.gmra.mxu0 %v962
    %v964 = vpop.f32.mrf.mxu0
    %v965 = vadd.f32 %v935, %v964
    %v966 = vand.u32 %v869, 4294901760
    %v967 = vsub.f32 %v869, %v966
    %968 = vmatmul.f32.gmra.mxu0 %v967
    %v969 = vpop.f32.mrf.mxu0
    %v970 = vadd.f32 %v939, %v969
    %971 = vdwg.mxu0
    %972 = vmatpush.msra.mxu0 0.0
    %973 = vmatpush.msra.mxu0 0.0
    %974 = vmatpush.msra.mxu0 0.0
    %975 = vmatpush.msra.mxu0 0.0
    %976 = vmatpush.msra.mxu0 0.0
    %977 = vmatpush.msra.mxu0 0.0
    %978 = vmatpush.msra.mxu0 0.0
    %979 = vmatpush.msra.mxu0 0.0
    %980 = vmatpush.msra.mxu0 0.0
    %981 = vmatpush.msra.mxu0 0.0
    %982 = vmatpush.msra.mxu0 0.0
    %983 = vmatpush.msra.mxu0 0.0
    %984 = vmatpush.msra.mxu0 0.0
    %985 = vmatpush.msra.mxu0 0.0
    %v986 = vand.u32 %v79, 4294901760
    %987 = vmatpush.msra.mxu0 %v986
    %v988 = vand.u32 %v78, 4294901760
    %989 = vmatpush.msra.mxu0 %v988
    %v990 = vand.u32 %v866, 4294901760
    %v991 = vsub.f32 %v866, %v990
    %v992 = vand.u32 %v991, 4294901760
    %993 = vmatmul.f32.gmra.mxu0 %v992
    %v994 = vpop.f32.mrf.mxu0
    %v995 = vadd.f32 %v965, %v994
    %v996 = vand.u32 %v869, 4294901760
    %v997 = vsub.f32 %v869, %v996
    %v998 = vand.u32 %v997, 4294901760
    %999 = vmatmul.f32.gmra.mxu0 %v998
    %v1000 = vpop.f32.mrf.mxu0
    %v1001 = vadd.f32 %v970, %v1000
    %1002 = vdwg.mxu0
    %1003 = vmatpush.msra.mxu0 0.0
    %1004 = vmatpush.msra.mxu0 0.0
    %1005 = vmatpush.msra.mxu0 0.0
    %1006 = vmatpush.msra.mxu0 0.0
    %1007 = vmatpush.msra.mxu0 0.0
    %1008 = vmatpush.msra.mxu0 0.0
    %1009 = vmatpush.msra.mxu0 0.0
    %1010 = vmatpush.msra.mxu0 0.0
    %1011 = vmatpush.msra.mxu0 0.0
    %1012 = vmatpush.msra.mxu0 0.0
    %1013 = vmatpush.msra.mxu0 0.0
    %1014 = vmatpush.msra.mxu0 0.0
    %1015 = vmatpush.msra.mxu0 0.0
    %1016 = vmatpush.msra.mxu0 0.0
    %v1017 = vand.u32 %v79, 4294901760
    %v1018 = vsub.f32 %v79, %v1017
    %v1019 = vand.u32 %v1018, 4294901760
    %1020 = vmatpush.msra.mxu0 %v1019
    %v1021 = vand.u32 %v78, 4294901760
    %v1022 = vsub.f32 %v78, %v1021
    %v1023 = vand.u32 %v1022, 4294901760
    %1024 = vmatpush.msra.mxu0 %v1023
    %v1025 = vand.u32 %v866, 4294901760
    %1026 = vmatmul.f32.gmra.mxu0 %v1025
    %v1027 = vpop.f32.mrf.mxu0
    %v1028 = vadd.f32 %v995, %v1027
    %v1029 = vand.u32 %v869, 4294901760
    %1030 = vmatmul.f32.gmra.mxu0 %v1029
    %v1031 = vpop.f32.mrf.mxu0
    %v1032 = vadd.f32 %v1001, %v1031
    %1033 = vdwg.mxu0
    %1034 = vmatpush.msra.mxu0 0.0
    %1035 = vmatpush.msra.mxu0 0.0
    %1036 = vmatpush.msra.mxu0 0.0
    %1037 = vmatpush.msra.mxu0 0.0
    %1038 = vmatpush.msra.mxu0 0.0
    %1039 = vmatpush.msra.mxu0 0.0
    %1040 = vmatpush.msra.mxu0 0.0
    %1041 = vmatpush.msra.mxu0 0.0
    %1042 = vmatpush.msra.mxu0 0.0
    %1043 = vmatpush.msra.mxu0 0.0
    %1044 = vmatpush.msra.mxu0 0.0
    %1045 = vmatpush.msra.mxu0 0.0
    %1046 = vmatpush.msra.mxu0 0.0
    %1047 = vmatpush.msra.mxu0 0.0
    %v1048 = vand.u32 %v79, 4294901760
    %1049 = vmatpush.msra.mxu0 %v1048
    %v1050 = vand.u32 %v78, 4294901760
    %1051 = vmatpush.msra.mxu0 %v1050
    %v1052 = vand.u32 %v866, 4294901760
    %1053 = vmatmul.f32.gmra.mxu0 %v1052
    %v1054 = vpop.f32.mrf.mxu0
    %v1055 = vadd.f32 %v1028, %v1054
    %v1056 = vand.u32 %v869, 4294901760
    %1057 = vmatmul.f32.gmra.mxu0 %v1056
    %v1058 = vpop.f32.mrf.mxu0
    %v1059 = vadd.f32 %v1032, %v1058
    %1060 = vdwg.mxu0
    %v1062 = vsel %vm80, %v72, 0
    %v1065 = vsel %vm80, %v73, 0
    %1067 = vmatpush.msra.mxu0 0.0
    %1068 = vmatpush.msra.mxu0 0.0
    %1069 = vmatpush.msra.mxu0 0.0
    %1070 = vmatpush.msra.mxu0 0.0
    %1071 = vmatpush.msra.mxu0 0.0
    %1072 = vmatpush.msra.mxu0 0.0
    %1073 = vmatpush.msra.mxu0 0.0
    %1074 = vmatpush.msra.mxu0 0.0
    %1075 = vmatpush.msra.mxu0 0.0
    %1076 = vmatpush.msra.mxu0 0.0
    %1077 = vmatpush.msra.mxu0 0.0
    %1078 = vmatpush.msra.mxu0 0.0
    %1079 = vmatpush.msra.mxu0 0.0
    %1080 = vmatpush.msra.mxu0 0.0
    %v1081 = vand.u32 %v79, 4294901760
    %1082 = vmatpush.msra.mxu0 %v1081
    %v1083 = vand.u32 %v78, 4294901760
    %1084 = vmatpush.msra.mxu0 %v1083
    %v1085 = vand.u32 %v1062, 4294901760
    %v1086 = vsub.f32 %v1062, %v1085
    %v1087 = vand.u32 %v1086, 4294901760
    %v1088 = vsub.f32 %v1086, %v1087
    %v1089 = vand.u32 %v1088, 4294901760
    %1090 = vmatmul.f32.gmra.mxu0 %v1089
    %v1091 = vpop.f32.mrf.mxu0
    %v1092 = vadd.f32 0.0, %v1091
    %v1093 = vand.u32 %v1065, 4294901760
    %v1094 = vsub.f32 %v1065, %v1093
    %v1095 = vand.u32 %v1094, 4294901760
    %v1096 = vsub.f32 %v1094, %v1095
    %v1097 = vand.u32 %v1096, 4294901760
    %1098 = vmatmul.f32.gmra.mxu0 %v1097
    %v1099 = vpop.f32.mrf.mxu0
    %v1100 = vadd.f32 0.0, %v1099
    %1101 = vdwg.mxu0
    %1102 = vmatpush.msra.mxu0 0.0
    %1103 = vmatpush.msra.mxu0 0.0
    %1104 = vmatpush.msra.mxu0 0.0
    %1105 = vmatpush.msra.mxu0 0.0
    %1106 = vmatpush.msra.mxu0 0.0
    %1107 = vmatpush.msra.mxu0 0.0
    %1108 = vmatpush.msra.mxu0 0.0
    %1109 = vmatpush.msra.mxu0 0.0
    %1110 = vmatpush.msra.mxu0 0.0
    %1111 = vmatpush.msra.mxu0 0.0
    %1112 = vmatpush.msra.mxu0 0.0
    %1113 = vmatpush.msra.mxu0 0.0
    %1114 = vmatpush.msra.mxu0 0.0
    %1115 = vmatpush.msra.mxu0 0.0
    %v1116 = vand.u32 %v79, 4294901760
    %v1117 = vsub.f32 %v79, %v1116
    %v1118 = vand.u32 %v1117, 4294901760
    %v1119 = vsub.f32 %v1117, %v1118
    %v1120 = vand.u32 %v1119, 4294901760
    %1121 = vmatpush.msra.mxu0 %v1120
    %v1122 = vand.u32 %v78, 4294901760
    %v1123 = vsub.f32 %v78, %v1122
    %v1124 = vand.u32 %v1123, 4294901760
    %v1125 = vsub.f32 %v1123, %v1124
    %v1126 = vand.u32 %v1125, 4294901760
    %1127 = vmatpush.msra.mxu0 %v1126
    %v1128 = vand.u32 %v1062, 4294901760
    %1129 = vmatmul.f32.gmra.mxu0 %v1128
    %v1130 = vpop.f32.mrf.mxu0
    %v1131 = vadd.f32 %v1092, %v1130
    %v1132 = vand.u32 %v1065, 4294901760
    %1133 = vmatmul.f32.gmra.mxu0 %v1132
    %v1134 = vpop.f32.mrf.mxu0
    %v1135 = vadd.f32 %v1100, %v1134
    %1136 = vdwg.mxu0
    %1137 = vmatpush.msra.mxu0 0.0
    %1138 = vmatpush.msra.mxu0 0.0
    %1139 = vmatpush.msra.mxu0 0.0
    %1140 = vmatpush.msra.mxu0 0.0
    %1141 = vmatpush.msra.mxu0 0.0
    %1142 = vmatpush.msra.mxu0 0.0
    %1143 = vmatpush.msra.mxu0 0.0
    %1144 = vmatpush.msra.mxu0 0.0
    %1145 = vmatpush.msra.mxu0 0.0
    %1146 = vmatpush.msra.mxu0 0.0
    %1147 = vmatpush.msra.mxu0 0.0
    %1148 = vmatpush.msra.mxu0 0.0
    %1149 = vmatpush.msra.mxu0 0.0
    %1150 = vmatpush.msra.mxu0 0.0
    %v1151 = vand.u32 %v79, 4294901760
    %v1152 = vsub.f32 %v79, %v1151
    %1153 = vmatpush.msra.mxu0 %v1152
    %v1154 = vand.u32 %v78, 4294901760
    %v1155 = vsub.f32 %v78, %v1154
    %1156 = vmatpush.msra.mxu0 %v1155
    %v1157 = vand.u32 %v1062, 4294901760
    %v1158 = vsub.f32 %v1062, %v1157
    %1159 = vmatmul.f32.gmra.mxu0 %v1158
    %v1160 = vpop.f32.mrf.mxu0
    %v1161 = vadd.f32 %v1131, %v1160
    %v1162 = vand.u32 %v1065, 4294901760
    %v1163 = vsub.f32 %v1065, %v1162
    %1164 = vmatmul.f32.gmra.mxu0 %v1163
    %v1165 = vpop.f32.mrf.mxu0
    %v1166 = vadd.f32 %v1135, %v1165
    %1167 = vdwg.mxu0
    %1168 = vmatpush.msra.mxu0 0.0
    %1169 = vmatpush.msra.mxu0 0.0
    %1170 = vmatpush.msra.mxu0 0.0
    %1171 = vmatpush.msra.mxu0 0.0
    %1172 = vmatpush.msra.mxu0 0.0
    %1173 = vmatpush.msra.mxu0 0.0
    %1174 = vmatpush.msra.mxu0 0.0
    %1175 = vmatpush.msra.mxu0 0.0
    %1176 = vmatpush.msra.mxu0 0.0
    %1177 = vmatpush.msra.mxu0 0.0
    %1178 = vmatpush.msra.mxu0 0.0
    %1179 = vmatpush.msra.mxu0 0.0
    %1180 = vmatpush.msra.mxu0 0.0
    %1181 = vmatpush.msra.mxu0 0.0
    %v1182 = vand.u32 %v79, 4294901760
    %1183 = vmatpush.msra.mxu0 %v1182
    %v1184 = vand.u32 %v78, 4294901760
    %1185 = vmatpush.msra.mxu0 %v1184
    %v1186 = vand.u32 %v1062, 4294901760
    %v1187 = vsub.f32 %v1062, %v1186
    %v1188 = vand.u32 %v1187, 4294901760
    %1189 = vmatmul.f32.gmra.mxu0 %v1188
    %v1190 = vpop.f32.mrf.mxu0
    %v1191 = vadd.f32 %v1161, %v1190
    %v1192 = vand.u32 %v1065, 4294901760
    %v1193 = vsub.f32 %v1065, %v1192
    %v1194 = vand.u32 %v1193, 4294901760
    %1195 = vmatmul.f32.gmra.mxu0 %v1194
    %v1196 = vpop.f32.mrf.mxu0
    %v1197 = vadd.f32 %v1166, %v1196
    %1198 = vdwg.mxu0
    %1199 = vmatpush.msra.mxu0 0.0
    %1200 = vmatpush.msra.mxu0 0.0
    %1201 = vmatpush.msra.mxu0 0.0
    %1202 = vmatpush.msra.mxu0 0.0
    %1203 = vmatpush.msra.mxu0 0.0
    %1204 = vmatpush.msra.mxu0 0.0
    %1205 = vmatpush.msra.mxu0 0.0
    %1206 = vmatpush.msra.mxu0 0.0
    %1207 = vmatpush.msra.mxu0 0.0
    %1208 = vmatpush.msra.mxu0 0.0
    %1209 = vmatpush.msra.mxu0 0.0
    %1210 = vmatpush.msra.mxu0 0.0
    %1211 = vmatpush.msra.mxu0 0.0
    %1212 = vmatpush.msra.mxu0 0.0
    %v1213 = vand.u32 %v79, 4294901760
    %v1214 = vsub.f32 %v79, %v1213
    %v1215 = vand.u32 %v1214, 4294901760
    %1216 = vmatpush.msra.mxu0 %v1215
    %v1217 = vand.u32 %v78, 4294901760
    %v1218 = vsub.f32 %v78, %v1217
    %v1219 = vand.u32 %v1218, 4294901760
    %1220 = vmatpush.msra.mxu0 %v1219
    %v1221 = vand.u32 %v1062, 4294901760
    %1222 = vmatmul.f32.gmra.mxu0 %v1221
    %v1223 = vpop.f32.mrf.mxu0
    %v1224 = vadd.f32 %v1191, %v1223
    %v1225 = vand.u32 %v1065, 4294901760
    %1226 = vmatmul.f32.gmra.mxu0 %v1225
    %v1227 = vpop.f32.mrf.mxu0
    %v1228 = vadd.f32 %v1197, %v1227
    %1229 = vdwg.mxu0
    %1230 = vmatpush.msra.mxu0 0.0
    %1231 = vmatpush.msra.mxu0 0.0
    %1232 = vmatpush.msra.mxu0 0.0
    %1233 = vmatpush.msra.mxu0 0.0
    %1234 = vmatpush.msra.mxu0 0.0
    %1235 = vmatpush.msra.mxu0 0.0
    %1236 = vmatpush.msra.mxu0 0.0
    %1237 = vmatpush.msra.mxu0 0.0
    %1238 = vmatpush.msra.mxu0 0.0
    %1239 = vmatpush.msra.mxu0 0.0
    %1240 = vmatpush.msra.mxu0 0.0
    %1241 = vmatpush.msra.mxu0 0.0
    %1242 = vmatpush.msra.mxu0 0.0
    %1243 = vmatpush.msra.mxu0 0.0
    %v1244 = vand.u32 %v79, 4294901760
    %1245 = vmatpush.msra.mxu0 %v1244
    %v1246 = vand.u32 %v78, 4294901760
    %1247 = vmatpush.msra.mxu0 %v1246
    %v1248 = vand.u32 %v1062, 4294901760
    %1249 = vmatmul.f32.gmra.mxu0 %v1248
    %v1250 = vpop.f32.mrf.mxu0
    %v1251 = vadd.f32 %v1224, %v1250
    %v1252 = vand.u32 %v1065, 4294901760
    %1253 = vmatmul.f32.gmra.mxu0 %v1252
    %v1254 = vpop.f32.mrf.mxu0
    %v1255 = vadd.f32 %v1228, %v1254
    %1256 = vdwg.mxu0
    %v1258 = vsel %vm80, %v74, 0
    %v1261 = vsel %vm80, %v75, 0
    %1263 = vmatpush.msra.mxu0 0.0
    %1264 = vmatpush.msra.mxu0 0.0
    %1265 = vmatpush.msra.mxu0 0.0
    %1266 = vmatpush.msra.mxu0 0.0
    %1267 = vmatpush.msra.mxu0 0.0
    %1268 = vmatpush.msra.mxu0 0.0
    %1269 = vmatpush.msra.mxu0 0.0
    %1270 = vmatpush.msra.mxu0 0.0
    %1271 = vmatpush.msra.mxu0 0.0
    %1272 = vmatpush.msra.mxu0 0.0
    %1273 = vmatpush.msra.mxu0 0.0
    %1274 = vmatpush.msra.mxu0 0.0
    %1275 = vmatpush.msra.mxu0 0.0
    %1276 = vmatpush.msra.mxu0 0.0
    %v1277 = vand.u32 %v79, 4294901760
    %1278 = vmatpush.msra.mxu0 %v1277
    %v1279 = vand.u32 %v78, 4294901760
    %1280 = vmatpush.msra.mxu0 %v1279
    %v1281 = vand.u32 %v1258, 4294901760
    %v1282 = vsub.f32 %v1258, %v1281
    %v1283 = vand.u32 %v1282, 4294901760
    %v1284 = vsub.f32 %v1282, %v1283
    %v1285 = vand.u32 %v1284, 4294901760
    %1286 = vmatmul.f32.gmra.mxu0 %v1285
    %v1287 = vpop.f32.mrf.mxu0
    %v1288 = vadd.f32 0.0, %v1287
    %v1289 = vand.u32 %v1261, 4294901760
    %v1290 = vsub.f32 %v1261, %v1289
    %v1291 = vand.u32 %v1290, 4294901760
    %v1292 = vsub.f32 %v1290, %v1291
    %v1293 = vand.u32 %v1292, 4294901760
    %1294 = vmatmul.f32.gmra.mxu0 %v1293
    %v1295 = vpop.f32.mrf.mxu0
    %v1296 = vadd.f32 0.0, %v1295
    %1297 = vdwg.mxu0
    %1298 = vmatpush.msra.mxu0 0.0
    %1299 = vmatpush.msra.mxu0 0.0
    %1300 = vmatpush.msra.mxu0 0.0
    %1301 = vmatpush.msra.mxu0 0.0
    %1302 = vmatpush.msra.mxu0 0.0
    %1303 = vmatpush.msra.mxu0 0.0
    %1304 = vmatpush.msra.mxu0 0.0
    %1305 = vmatpush.msra.mxu0 0.0
    %1306 = vmatpush.msra.mxu0 0.0
    %1307 = vmatpush.msra.mxu0 0.0
    %1308 = vmatpush.msra.mxu0 0.0
    %1309 = vmatpush.msra.mxu0 0.0
    %1310 = vmatpush.msra.mxu0 0.0
    %1311 = vmatpush.msra.mxu0 0.0
    %v1312 = vand.u32 %v79, 4294901760
    %v1313 = vsub.f32 %v79, %v1312
    %v1314 = vand.u32 %v1313, 4294901760
    %v1315 = vsub.f32 %v1313, %v1314
    %v1316 = vand.u32 %v1315, 4294901760
    %1317 = vmatpush.msra.mxu0 %v1316
    %v1318 = vand.u32 %v78, 4294901760
    %v1319 = vsub.f32 %v78, %v1318
    %v1320 = vand.u32 %v1319, 4294901760
    %v1321 = vsub.f32 %v1319, %v1320
    %v1322 = vand.u32 %v1321, 4294901760
    %1323 = vmatpush.msra.mxu0 %v1322
    %v1324 = vand.u32 %v1258, 4294901760
    %1325 = vmatmul.f32.gmra.mxu0 %v1324
    %v1326 = vpop.f32.mrf.mxu0
    %v1327 = vadd.f32 %v1288, %v1326
    %v1328 = vand.u32 %v1261, 4294901760
    %1329 = vmatmul.f32.gmra.mxu0 %v1328
    %v1330 = vpop.f32.mrf.mxu0
    %v1331 = vadd.f32 %v1296, %v1330
    %1332 = vdwg.mxu0
    %1333 = vmatpush.msra.mxu0 0.0
    %1334 = vmatpush.msra.mxu0 0.0
    %1335 = vmatpush.msra.mxu0 0.0
    %1336 = vmatpush.msra.mxu0 0.0
    %1337 = vmatpush.msra.mxu0 0.0
    %1338 = vmatpush.msra.mxu0 0.0
    %1339 = vmatpush.msra.mxu0 0.0
    %1340 = vmatpush.msra.mxu0 0.0
    %1341 = vmatpush.msra.mxu0 0.0
    %1342 = vmatpush.msra.mxu0 0.0
    %1343 = vmatpush.msra.mxu0 0.0
    %1344 = vmatpush.msra.mxu0 0.0
    %1345 = vmatpush.msra.mxu0 0.0
    %1346 = vmatpush.msra.mxu0 0.0
    %v1347 = vand.u32 %v79, 4294901760
    %v1348 = vsub.f32 %v79, %v1347
    %1349 = vmatpush.msra.mxu0 %v1348
    %v1350 = vand.u32 %v78, 4294901760
    %v1351 = vsub.f32 %v78, %v1350
    %1352 = vmatpush.msra.mxu0 %v1351
    %v1353 = vand.u32 %v1258, 4294901760
    %v1354 = vsub.f32 %v1258, %v1353
    %1355 = vmatmul.f32.gmra.mxu0 %v1354
    %v1356 = vpop.f32.mrf.mxu0
    %v1357 = vadd.f32 %v1327, %v1356
    %v1358 = vand.u32 %v1261, 4294901760
    %v1359 = vsub.f32 %v1261, %v1358
    %1360 = vmatmul.f32.gmra.mxu0 %v1359
    %v1361 = vpop.f32.mrf.mxu0
    %v1362 = vadd.f32 %v1331, %v1361
    %1363 = vdwg.mxu0
    %1364 = vmatpush.msra.mxu0 0.0
    %1365 = vmatpush.msra.mxu0 0.0
    %1366 = vmatpush.msra.mxu0 0.0
    %1367 = vmatpush.msra.mxu0 0.0
    %1368 = vmatpush.msra.mxu0 0.0
    %1369 = vmatpush.msra.mxu0 0.0
    %1370 = vmatpush.msra.mxu0 0.0
    %1371 = vmatpush.msra.mxu0 0.0
    %1372 = vmatpush.msra.mxu0 0.0
    %1373 = vmatpush.msra.mxu0 0.0
    %1374 = vmatpush.msra.mxu0 0.0
    %1375 = vmatpush.msra.mxu0 0.0
    %1376 = vmatpush.msra.mxu0 0.0
    %1377 = vmatpush.msra.mxu0 0.0
    %v1378 = vand.u32 %v79, 4294901760
    %1379 = vmatpush.msra.mxu0 %v1378
    %v1380 = vand.u32 %v78, 4294901760
    %1381 = vmatpush.msra.mxu0 %v1380
    %v1382 = vand.u32 %v1258, 4294901760
    %v1383 = vsub.f32 %v1258, %v1382
    %v1384 = vand.u32 %v1383, 4294901760
    %1385 = vmatmul.f32.gmra.mxu0 %v1384
    %v1386 = vpop.f32.mrf.mxu0
    %v1387 = vadd.f32 %v1357, %v1386
    %v1388 = vand.u32 %v1261, 4294901760
    %v1389 = vsub.f32 %v1261, %v1388
    %v1390 = vand.u32 %v1389, 4294901760
    %1391 = vmatmul.f32.gmra.mxu0 %v1390
    %v1392 = vpop.f32.mrf.mxu0
    %v1393 = vadd.f32 %v1362, %v1392
    %1394 = vdwg.mxu0
    %1395 = vmatpush.msra.mxu0 0.0
    %1396 = vmatpush.msra.mxu0 0.0
    %1397 = vmatpush.msra.mxu0 0.0
    %1398 = vmatpush.msra.mxu0 0.0
    %1399 = vmatpush.msra.mxu0 0.0
    %1400 = vmatpush.msra.mxu0 0.0
    %1401 = vmatpush.msra.mxu0 0.0
    %1402 = vmatpush.msra.mxu0 0.0
    %1403 = vmatpush.msra.mxu0 0.0
    %1404 = vmatpush.msra.mxu0 0.0
    %1405 = vmatpush.msra.mxu0 0.0
    %1406 = vmatpush.msra.mxu0 0.0
    %1407 = vmatpush.msra.mxu0 0.0
    %1408 = vmatpush.msra.mxu0 0.0
    %v1409 = vand.u32 %v79, 4294901760
    %v1410 = vsub.f32 %v79, %v1409
    %v1411 = vand.u32 %v1410, 4294901760
    %1412 = vmatpush.msra.mxu0 %v1411
    %v1413 = vand.u32 %v78, 4294901760
    %v1414 = vsub.f32 %v78, %v1413
    %v1415 = vand.u32 %v1414, 4294901760
    %1416 = vmatpush.msra.mxu0 %v1415
    %v1417 = vand.u32 %v1258, 4294901760
    %1418 = vmatmul.f32.gmra.mxu0 %v1417
    %v1419 = vpop.f32.mrf.mxu0
    %v1420 = vadd.f32 %v1387, %v1419
    %v1421 = vand.u32 %v1261, 4294901760
    %1422 = vmatmul.f32.gmra.mxu0 %v1421
    %v1423 = vpop.f32.mrf.mxu0
    %v1424 = vadd.f32 %v1393, %v1423
    %1425 = vdwg.mxu0
    %1426 = vmatpush.msra.mxu0 0.0
    %1427 = vmatpush.msra.mxu0 0.0
    %1428 = vmatpush.msra.mxu0 0.0
    %1429 = vmatpush.msra.mxu0 0.0
    %1430 = vmatpush.msra.mxu0 0.0
    %1431 = vmatpush.msra.mxu0 0.0
    %1432 = vmatpush.msra.mxu0 0.0
    %1433 = vmatpush.msra.mxu0 0.0
    %1434 = vmatpush.msra.mxu0 0.0
    %1435 = vmatpush.msra.mxu0 0.0
    %1436 = vmatpush.msra.mxu0 0.0
    %1437 = vmatpush.msra.mxu0 0.0
    %1438 = vmatpush.msra.mxu0 0.0
    %1439 = vmatpush.msra.mxu0 0.0
    %v1440 = vand.u32 %v79, 4294901760
    %1441 = vmatpush.msra.mxu0 %v1440
    %v1442 = vand.u32 %v78, 4294901760
    %1443 = vmatpush.msra.mxu0 %v1442
    %v1444 = vand.u32 %v1258, 4294901760
    %1445 = vmatmul.f32.gmra.mxu0 %v1444
    %v1446 = vpop.f32.mrf.mxu0
    %v1447 = vadd.f32 %v1420, %v1446
    %v1448 = vand.u32 %v1261, 4294901760
    %1449 = vmatmul.f32.gmra.mxu0 %v1448
    %v1450 = vpop.f32.mrf.mxu0
    %v1451 = vadd.f32 %v1424, %v1450
    %1452 = vdwg.mxu0
    %v1454 = vsel %vm80, %v76, 0
    %v1457 = vsel %vm80, %v77, 0
    %1459 = vmatpush.msra.mxu0 0.0
    %1460 = vmatpush.msra.mxu0 0.0
    %1461 = vmatpush.msra.mxu0 0.0
    %1462 = vmatpush.msra.mxu0 0.0
    %1463 = vmatpush.msra.mxu0 0.0
    %1464 = vmatpush.msra.mxu0 0.0
    %1465 = vmatpush.msra.mxu0 0.0
    %1466 = vmatpush.msra.mxu0 0.0
    %1467 = vmatpush.msra.mxu0 0.0
    %1468 = vmatpush.msra.mxu0 0.0
    %1469 = vmatpush.msra.mxu0 0.0
    %1470 = vmatpush.msra.mxu0 0.0
    %1471 = vmatpush.msra.mxu0 0.0
    %1472 = vmatpush.msra.mxu0 0.0
    %v1473 = vand.u32 %v79, 4294901760
    %1474 = vmatpush.msra.mxu0 %v1473
    %v1475 = vand.u32 %v78, 4294901760
    %1476 = vmatpush.msra.mxu0 %v1475
    %v1477 = vand.u32 %v1454, 4294901760
    %v1478 = vsub.f32 %v1454, %v1477
    %v1479 = vand.u32 %v1478, 4294901760
    %v1480 = vsub.f32 %v1478, %v1479
    %v1481 = vand.u32 %v1480, 4294901760
    %1482 = vmatmul.f32.gmra.mxu0 %v1481
    %v1483 = vpop.f32.mrf.mxu0
    %v1484 = vadd.f32 0.0, %v1483
    %v1485 = vand.u32 %v1457, 4294901760
    %v1486 = vsub.f32 %v1457, %v1485
    %v1487 = vand.u32 %v1486, 4294901760
    %v1488 = vsub.f32 %v1486, %v1487
    %v1489 = vand.u32 %v1488, 4294901760
    %1490 = vmatmul.f32.gmra.mxu0 %v1489
    %v1491 = vpop.f32.mrf.mxu0
    %v1492 = vadd.f32 0.0, %v1491
    %1493 = vdwg.mxu0
    %1494 = vmatpush.msra.mxu0 0.0
    %1495 = vmatpush.msra.mxu0 0.0
    %1496 = vmatpush.msra.mxu0 0.0
    %1497 = vmatpush.msra.mxu0 0.0
    %1498 = vmatpush.msra.mxu0 0.0
    %1499 = vmatpush.msra.mxu0 0.0
    %1500 = vmatpush.msra.mxu0 0.0
    %1501 = vmatpush.msra.mxu0 0.0
    %1502 = vmatpush.msra.mxu0 0.0
    %1503 = vmatpush.msra.mxu0 0.0
    %1504 = vmatpush.msra.mxu0 0.0
    %1505 = vmatpush.msra.mxu0 0.0
    %1506 = vmatpush.msra.mxu0 0.0
    %1507 = vmatpush.msra.mxu0 0.0
    %v1508 = vand.u32 %v79, 4294901760
    %v1509 = vsub.f32 %v79, %v1508
    %v1510 = vand.u32 %v1509, 4294901760
    %v1511 = vsub.f32 %v1509, %v1510
    %v1512 = vand.u32 %v1511, 4294901760
    %1513 = vmatpush.msra.mxu0 %v1512
    %v1514 = vand.u32 %v78, 4294901760
    %v1515 = vsub.f32 %v78, %v1514
    %v1516 = vand.u32 %v1515, 4294901760
    %v1517 = vsub.f32 %v1515, %v1516
    %v1518 = vand.u32 %v1517, 4294901760
    %1519 = vmatpush.msra.mxu0 %v1518
    %v1520 = vand.u32 %v1454, 4294901760
    %1521 = vmatmul.f32.gmra.mxu0 %v1520
    %v1522 = vpop.f32.mrf.mxu0
    %v1523 = vadd.f32 %v1484, %v1522
    %v1524 = vand.u32 %v1457, 4294901760
    %1525 = vmatmul.f32.gmra.mxu0 %v1524
    %v1526 = vpop.f32.mrf.mxu0
    %v1527 = vadd.f32 %v1492, %v1526
    %1528 = vdwg.mxu0
    %1529 = vmatpush.msra.mxu0 0.0
    %1530 = vmatpush.msra.mxu0 0.0
    %1531 = vmatpush.msra.mxu0 0.0
    %1532 = vmatpush.msra.mxu0 0.0
    %1533 = vmatpush.msra.mxu0 0.0
    %1534 = vmatpush.msra.mxu0 0.0
    %1535 = vmatpush.msra.mxu0 0.0
    %1536 = vmatpush.msra.mxu0 0.0
    %1537 = vmatpush.msra.mxu0 0.0
    %1538 = vmatpush.msra.mxu0 0.0
    %1539 = vmatpush.msra.mxu0 0.0
    %1540 = vmatpush.msra.mxu0 0.0
    %1541 = vmatpush.msra.mxu0 0.0
    %1542 = vmatpush.msra.mxu0 0.0
    %v1543 = vand.u32 %v79, 4294901760
    %v1544 = vsub.f32 %v79, %v1543
    %1545 = vmatpush.msra.mxu0 %v1544
    %v1546 = vand.u32 %v78, 4294901760
    %v1547 = vsub.f32 %v78, %v1546
    %1548 = vmatpush.msra.mxu0 %v1547
    %v1549 = vand.u32 %v1454, 4294901760
    %v1550 = vsub.f32 %v1454, %v1549
    %1551 = vmatmul.f32.gmra.mxu0 %v1550
    %v1552 = vpop.f32.mrf.mxu0
    %v1553 = vadd.f32 %v1523, %v1552
    %v1554 = vand.u32 %v1457, 4294901760
    %v1555 = vsub.f32 %v1457, %v1554
    %1556 = vmatmul.f32.gmra.mxu0 %v1555
    %v1557 = vpop.f32.mrf.mxu0
    %v1558 = vadd.f32 %v1527, %v1557
    %1559 = vdwg.mxu0
    %1560 = vmatpush.msra.mxu0 0.0
    %1561 = vmatpush.msra.mxu0 0.0
    %1562 = vmatpush.msra.mxu0 0.0
    %1563 = vmatpush.msra.mxu0 0.0
    %1564 = vmatpush.msra.mxu0 0.0
    %1565 = vmatpush.msra.mxu0 0.0
    %1566 = vmatpush.msra.mxu0 0.0
    %1567 = vmatpush.msra.mxu0 0.0
    %1568 = vmatpush.msra.mxu0 0.0
    %1569 = vmatpush.msra.mxu0 0.0
    %1570 = vmatpush.msra.mxu0 0.0
    %1571 = vmatpush.msra.mxu0 0.0
    %1572 = vmatpush.msra.mxu0 0.0
    %1573 = vmatpush.msra.mxu0 0.0
    %v1574 = vand.u32 %v79, 4294901760
    %1575 = vmatpush.msra.mxu0 %v1574
    %v1576 = vand.u32 %v78, 4294901760
    %1577 = vmatpush.msra.mxu0 %v1576
    %v1578 = vand.u32 %v1454, 4294901760
    %v1579 = vsub.f32 %v1454, %v1578
    %v1580 = vand.u32 %v1579, 4294901760
    %1581 = vmatmul.f32.gmra.mxu0 %v1580
    %v1582 = vpop.f32.mrf.mxu0
    %v1583 = vadd.f32 %v1553, %v1582
    %v1584 = vand.u32 %v1457, 4294901760
    %v1585 = vsub.f32 %v1457, %v1584
    %v1586 = vand.u32 %v1585, 4294901760
    %1587 = vmatmul.f32.gmra.mxu0 %v1586
    %v1588 = vpop.f32.mrf.mxu0
    %v1589 = vadd.f32 %v1558, %v1588
    %1590 = vdwg.mxu0
    %1591 = vmatpush.msra.mxu0 0.0
    %1592 = vmatpush.msra.mxu0 0.0
    %1593 = vmatpush.msra.mxu0 0.0
    %1594 = vmatpush.msra.mxu0 0.0
    %1595 = vmatpush.msra.mxu0 0.0
    %1596 = vmatpush.msra.mxu0 0.0
    %1597 = vmatpush.msra.mxu0 0.0
    %1598 = vmatpush.msra.mxu0 0.0
    %1599 = vmatpush.msra.mxu0 0.0
    %1600 = vmatpush.msra.mxu0 0.0
    %1601 = vmatpush.msra.mxu0 0.0
    %1602 = vmatpush.msra.mxu0 0.0
    %1603 = vmatpush.msra.mxu0 0.0
    %1604 = vmatpush.msra.mxu0 0.0
    %v1605 = vand.u32 %v79, 4294901760
    %v1606 = vsub.f32 %v79, %v1605
    %v1607 = vand.u32 %v1606, 4294901760
    %1608 = vmatpush.msra.mxu0 %v1607
    %v1609 = vand.u32 %v78, 4294901760
    %v1610 = vsub.f32 %v78, %v1609
    %v1611 = vand.u32 %v1610, 4294901760
    %1612 = vmatpush.msra.mxu0 %v1611
    %v1613 = vand.u32 %v1454, 4294901760
    %1614 = vmatmul.f32.gmra.mxu0 %v1613
    %v1615 = vpop.f32.mrf.mxu0
    %v1616 = vadd.f32 %v1583, %v1615
    %v1617 = vand.u32 %v1457, 4294901760
    %1618 = vmatmul.f32.gmra.mxu0 %v1617
    %v1619 = vpop.f32.mrf.mxu0
    %v1620 = vadd.f32 %v1589, %v1619
    %1621 = vdwg.mxu0
    %1622 = vmatpush.msra.mxu0 0.0
    %1623 = vmatpush.msra.mxu0 0.0
    %1624 = vmatpush.msra.mxu0 0.0
    %1625 = vmatpush.msra.mxu0 0.0
    %1626 = vmatpush.msra.mxu0 0.0
    %1627 = vmatpush.msra.mxu0 0.0
    %1628 = vmatpush.msra.mxu0 0.0
    %1629 = vmatpush.msra.mxu0 0.0
    %1630 = vmatpush.msra.mxu0 0.0
    %1631 = vmatpush.msra.mxu0 0.0
    %1632 = vmatpush.msra.mxu0 0.0
    %1633 = vmatpush.msra.mxu0 0.0
    %1634 = vmatpush.msra.mxu0 0.0
    %1635 = vmatpush.msra.mxu0 0.0
    %v1636 = vand.u32 %v79, 4294901760
    %1637 = vmatpush.msra.mxu0 %v1636
    %v1638 = vand.u32 %v78, 4294901760
    %1639 = vmatpush.msra.mxu0 %v1638
    %v1640 = vand.u32 %v1454, 4294901760
    %1641 = vmatmul.f32.gmra.mxu0 %v1640
    %v1642 = vpop.f32.mrf.mxu0
    %v1643 = vadd.f32 %v1616, %v1642
    %v1644 = vand.u32 %v1457, 4294901760
    %1645 = vmatmul.f32.gmra.mxu0 %v1644
    %v1646 = vpop.f32.mrf.mxu0
    %v1647 = vadd.f32 %v1620, %v1646
    %1648 = vdwg.mxu0
    %v1649 = vld [vmem:[#allocation5] sm:$0xff]
    %v1650 = vld [vmem:[#allocation5 + $0x8] sm:$0xff]
    %v1652 = vsel %vm80, %v1649, 0
    %v1655 = vsel %vm80, %v1650, 0
    %1657 = vmatpush.msra.mxu0 0.0
    %1658 = vmatpush.msra.mxu0 0.0
    %1659 = vmatpush.msra.mxu0 0.0
    %1660 = vmatpush.msra.mxu0 0.0
    %1661 = vmatpush.msra.mxu0 0.0
    %1662 = vmatpush.msra.mxu0 0.0
    %1663 = vmatpush.msra.mxu0 0.0
    %1664 = vmatpush.msra.mxu0 0.0
    %1665 = vmatpush.msra.mxu0 0.0
    %1666 = vmatpush.msra.mxu0 0.0
    %1667 = vmatpush.msra.mxu0 0.0
    %1668 = vmatpush.msra.mxu0 0.0
    %1669 = vmatpush.msra.mxu0 0.0
    %1670 = vmatpush.msra.mxu0 0.0
    %v1671 = vand.u32 %v275, 4294901760
    %1672 = vmatpush.msra.mxu0 %v1671
    %v1673 = vand.u32 %v271, 4294901760
    %1674 = vmatpush.msra.mxu0 %v1673
    %v1675 = vand.u32 %v1652, 4294901760
    %v1676 = vsub.f32 %v1652, %v1675
    %v1677 = vand.u32 %v1676, 4294901760
    %v1678 = vsub.f32 %v1676, %v1677
    %v1679 = vand.u32 %v1678, 4294901760
    %1680 = vmatmul.f32.gmra.mxu0 %v1679
    %v1681 = vpop.f32.mrf.mxu0
    %v1682 = vadd.f32 0.0, %v1681
    %v1683 = vand.u32 %v1655, 4294901760
    %v1684 = vsub.f32 %v1655, %v1683
    %v1685 = vand.u32 %v1684, 4294901760
    %v1686 = vsub.f32 %v1684, %v1685
    %v1687 = vand.u32 %v1686, 4294901760
    %1688 = vmatmul.f32.gmra.mxu0 %v1687
    %v1689 = vpop.f32.mrf.mxu0
    %v1690 = vadd.f32 0.0, %v1689
    %1691 = vdwg.mxu0
    %1692 = vmatpush.msra.mxu0 0.0
    %1693 = vmatpush.msra.mxu0 0.0
    %1694 = vmatpush.msra.mxu0 0.0
    %1695 = vmatpush.msra.mxu0 0.0
    %1696 = vmatpush.msra.mxu0 0.0
    %1697 = vmatpush.msra.mxu0 0.0
    %1698 = vmatpush.msra.mxu0 0.0
    %1699 = vmatpush.msra.mxu0 0.0
    %1700 = vmatpush.msra.mxu0 0.0
    %1701 = vmatpush.msra.mxu0 0.0
    %1702 = vmatpush.msra.mxu0 0.0
    %1703 = vmatpush.msra.mxu0 0.0
    %1704 = vmatpush.msra.mxu0 0.0
    %1705 = vmatpush.msra.mxu0 0.0
    %v1706 = vand.u32 %v275, 4294901760
    %v1707 = vsub.f32 %v275, %v1706
    %v1708 = vand.u32 %v1707, 4294901760
    %v1709 = vsub.f32 %v1707, %v1708
    %v1710 = vand.u32 %v1709, 4294901760
    %1711 = vmatpush.msra.mxu0 %v1710
    %v1712 = vand.u32 %v271, 4294901760
    %v1713 = vsub.f32 %v271, %v1712
    %v1714 = vand.u32 %v1713, 4294901760
    %v1715 = vsub.f32 %v1713, %v1714
    %v1716 = vand.u32 %v1715, 4294901760
    %1717 = vmatpush.msra.mxu0 %v1716
    %v1718 = vand.u32 %v1652, 4294901760
    %1719 = vmatmul.f32.gmra.mxu0 %v1718
    %v1720 = vpop.f32.mrf.mxu0
    %v1721 = vadd.f32 %v1682, %v1720
    %v1722 = vand.u32 %v1655, 4294901760
    %1723 = vmatmul.f32.gmra.mxu0 %v1722
    %v1724 = vpop.f32.mrf.mxu0
    %v1725 = vadd.f32 %v1690, %v1724
    %1726 = vdwg.mxu0
    %1727 = vmatpush.msra.mxu0 0.0
    %1728 = vmatpush.msra.mxu0 0.0
    %1729 = vmatpush.msra.mxu0 0.0
    %1730 = vmatpush.msra.mxu0 0.0
    %1731 = vmatpush.msra.mxu0 0.0
    %1732 = vmatpush.msra.mxu0 0.0
    %1733 = vmatpush.msra.mxu0 0.0
    %1734 = vmatpush.msra.mxu0 0.0
    %1735 = vmatpush.msra.mxu0 0.0
    %1736 = vmatpush.msra.mxu0 0.0
    %1737 = vmatpush.msra.mxu0 0.0
    %1738 = vmatpush.msra.mxu0 0.0
    %1739 = vmatpush.msra.mxu0 0.0
    %1740 = vmatpush.msra.mxu0 0.0
    %v1741 = vand.u32 %v275, 4294901760
    %v1742 = vsub.f32 %v275, %v1741
    %1743 = vmatpush.msra.mxu0 %v1742
    %v1744 = vand.u32 %v271, 4294901760
    %v1745 = vsub.f32 %v271, %v1744
    %1746 = vmatpush.msra.mxu0 %v1745
    %v1747 = vand.u32 %v1652, 4294901760
    %v1748 = vsub.f32 %v1652, %v1747
    %1749 = vmatmul.f32.gmra.mxu0 %v1748
    %v1750 = vpop.f32.mrf.mxu0
    %v1751 = vadd.f32 %v1721, %v1750
    %v1752 = vand.u32 %v1655, 4294901760
    %v1753 = vsub.f32 %v1655, %v1752
    %1754 = vmatmul.f32.gmra.mxu0 %v1753
    %v1755 = vpop.f32.mrf.mxu0
    %v1756 = vadd.f32 %v1725, %v1755
    %1757 = vdwg.mxu0
    %1758 = vmatpush.msra.mxu0 0.0
    %1759 = vmatpush.msra.mxu0 0.0
    %1760 = vmatpush.msra.mxu0 0.0
    %1761 = vmatpush.msra.mxu0 0.0
    %1762 = vmatpush.msra.mxu0 0.0
    %1763 = vmatpush.msra.mxu0 0.0
    %1764 = vmatpush.msra.mxu0 0.0
    %1765 = vmatpush.msra.mxu0 0.0
    %1766 = vmatpush.msra.mxu0 0.0
    %1767 = vmatpush.msra.mxu0 0.0
    %1768 = vmatpush.msra.mxu0 0.0
    %1769 = vmatpush.msra.mxu0 0.0
    %1770 = vmatpush.msra.mxu0 0.0
    %1771 = vmatpush.msra.mxu0 0.0
    %v1772 = vand.u32 %v275, 4294901760
    %1773 = vmatpush.msra.mxu0 %v1772
    %v1774 = vand.u32 %v271, 4294901760
    %1775 = vmatpush.msra.mxu0 %v1774
    %v1776 = vand.u32 %v1652, 4294901760
    %v1777 = vsub.f32 %v1652, %v1776
    %v1778 = vand.u32 %v1777, 4294901760
    %1779 = vmatmul.f32.gmra.mxu0 %v1778
    %v1780 = vpop.f32.mrf.mxu0
    %v1781 = vadd.f32 %v1751, %v1780
    %v1782 = vand.u32 %v1655, 4294901760
    %v1783 = vsub.f32 %v1655, %v1782
    %v1784 = vand.u32 %v1783, 4294901760
    %1785 = vmatmul.f32.gmra.mxu0 %v1784
    %v1786 = vpop.f32.mrf.mxu0
    %v1787 = vadd.f32 %v1756, %v1786
    %1788 = vdwg.mxu0
    %1789 = vmatpush.msra.mxu0 0.0
    %1790 = vmatpush.msra.mxu0 0.0
    %1791 = vmatpush.msra.mxu0 0.0
    %1792 = vmatpush.msra.mxu0 0.0
    %1793 = vmatpush.msra.mxu0 0.0
    %1794 = vmatpush.msra.mxu0 0.0
    %1795 = vmatpush.msra.mxu0 0.0
    %1796 = vmatpush.msra.mxu0 0.0
    %1797 = vmatpush.msra.mxu0 0.0
    %1798 = vmatpush.msra.mxu0 0.0
    %1799 = vmatpush.msra.mxu0 0.0
    %1800 = vmatpush.msra.mxu0 0.0
    %1801 = vmatpush.msra.mxu0 0.0
    %1802 = vmatpush.msra.mxu0 0.0
    %v1803 = vand.u32 %v275, 4294901760
    %v1804 = vsub.f32 %v275, %v1803
    %v1805 = vand.u32 %v1804, 4294901760
    %1806 = vmatpush.msra.mxu0 %v1805
    %v1807 = vand.u32 %v271, 4294901760
    %v1808 = vsub.f32 %v271, %v1807
    %v1809 = vand.u32 %v1808, 4294901760
    %1810 = vmatpush.msra.mxu0 %v1809
    %v1811 = vand.u32 %v1652, 4294901760
    %1812 = vmatmul.f32.gmra.mxu0 %v1811
    %v1813 = vpop.f32.mrf.mxu0
    %v1814 = vadd.f32 %v1781, %v1813
    %v1815 = vand.u32 %v1655, 4294901760
    %1816 = vmatmul.f32.gmra.mxu0 %v1815
    %v1817 = vpop.f32.mrf.mxu0
    %v1818 = vadd.f32 %v1787, %v1817
    %1819 = vdwg.mxu0
    %1820 = vmatpush.msra.mxu0 0.0
    %1821 = vmatpush.msra.mxu0 0.0
    %1822 = vmatpush.msra.mxu0 0.0
    %1823 = vmatpush.msra.mxu0 0.0
    %1824 = vmatpush.msra.mxu0 0.0
    %1825 = vmatpush.msra.mxu0 0.0
    %1826 = vmatpush.msra.mxu0 0.0
    %1827 = vmatpush.msra.mxu0 0.0
    %1828 = vmatpush.msra.mxu0 0.0
    %1829 = vmatpush.msra.mxu0 0.0
    %1830 = vmatpush.msra.mxu0 0.0
    %1831 = vmatpush.msra.mxu0 0.0
    %1832 = vmatpush.msra.mxu0 0.0
    %1833 = vmatpush.msra.mxu0 0.0
    %v1834 = vand.u32 %v275, 4294901760
    %1835 = vmatpush.msra.mxu0 %v1834
    %v1836 = vand.u32 %v271, 4294901760
    %1837 = vmatpush.msra.mxu0 %v1836
    %v1838 = vand.u32 %v1652, 4294901760
    %1839 = vmatmul.f32.gmra.mxu0 %v1838
    %v1840 = vpop.f32.mrf.mxu0
    %v1841 = vadd.f32 %v1814, %v1840
    %v1842 = vand.u32 %v1655, 4294901760
    %1843 = vmatmul.f32.gmra.mxu0 %v1842
    %v1844 = vpop.f32.mrf.mxu0
    %v1845 = vadd.f32 %v1818, %v1844
    %1846 = vdwg.mxu0
    %1847 = vmatpush.msra.mxu0 0.0
    %1848 = vmatpush.msra.mxu0 0.0
    %1849 = vmatpush.msra.mxu0 0.0
    %1850 = vmatpush.msra.mxu0 0.0
    %1851 = vmatpush.msra.mxu0 0.0
    %1852 = vmatpush.msra.mxu0 0.0
    %1853 = vmatpush.msra.mxu0 0.0
    %1854 = vmatpush.msra.mxu0 0.0
    %1855 = vmatpush.msra.mxu0 0.0
    %1856 = vmatpush.msra.mxu0 0.0
    %1857 = vmatpush.msra.mxu0 0.0
    %1858 = vmatpush.msra.mxu0 0.0
    %1859 = vmatpush.msra.mxu0 0.0
    %1860 = vmatpush.msra.mxu0 0.0
    %v1861 = vand.u32 %v471, 4294901760
    %1862 = vmatpush.msra.mxu0 %v1861
    %v1863 = vand.u32 %v467, 4294901760
    %1864 = vmatpush.msra.mxu0 %v1863
    %v1865 = vand.u32 %v1652, 4294901760
    %v1866 = vsub.f32 %v1652, %v1865
    %v1867 = vand.u32 %v1866, 4294901760
    %v1868 = vsub.f32 %v1866, %v1867
    %v1869 = vand.u32 %v1868, 4294901760
    %1870 = vmatmul.f32.gmra.mxu0 %v1869
    %v1871 = vpop.f32.mrf.mxu0
    %v1872 = vadd.f32 0.0, %v1871
    %v1873 = vand.u32 %v1655, 4294901760
    %v1874 = vsub.f32 %v1655, %v1873
    %v1875 = vand.u32 %v1874, 4294901760
    %v1876 = vsub.f32 %v1874, %v1875
    %v1877 = vand.u32 %v1876, 4294901760
    %1878 = vmatmul.f32.gmra.mxu0 %v1877
    %v1879 = vpop.f32.mrf.mxu0
    %v1880 = vadd.f32 0.0, %v1879
    %1881 = vdwg.mxu0
    %1882 = vmatpush.msra.mxu0 0.0
    %1883 = vmatpush.msra.mxu0 0.0
    %1884 = vmatpush.msra.mxu0 0.0
    %1885 = vmatpush.msra.mxu0 0.0
    %1886 = vmatpush.msra.mxu0 0.0
    %1887 = vmatpush.msra.mxu0 0.0
    %1888 = vmatpush.msra.mxu0 0.0
    %1889 = vmatpush.msra.mxu0 0.0
    %1890 = vmatpush.msra.mxu0 0.0
    %1891 = vmatpush.msra.mxu0 0.0
    %1892 = vmatpush.msra.mxu0 0.0
    %1893 = vmatpush.msra.mxu0 0.0
    %1894 = vmatpush.msra.mxu0 0.0
    %1895 = vmatpush.msra.mxu0 0.0
    %v1896 = vand.u32 %v471, 4294901760
    %v1897 = vsub.f32 %v471, %v1896
    %v1898 = vand.u32 %v1897, 4294901760
    %v1899 = vsub.f32 %v1897, %v1898
    %v1900 = vand.u32 %v1899, 4294901760
    %1901 = vmatpush.msra.mxu0 %v1900
    %v1902 = vand.u32 %v467, 4294901760
    %v1903 = vsub.f32 %v467, %v1902
    %v1904 = vand.u32 %v1903, 4294901760
    %v1905 = vsub.f32 %v1903, %v1904
    %v1906 = vand.u32 %v1905, 4294901760
    %1907 = vmatpush.msra.mxu0 %v1906
    %v1908 = vand.u32 %v1652, 4294901760
    %1909 = vmatmul.f32.gmra.mxu0 %v1908
    %v1910 = vpop.f32.mrf.mxu0
    %v1911 = vadd.f32 %v1872, %v1910
    %v1912 = vand.u32 %v1655, 4294901760
    %1913 = vmatmul.f32.gmra.mxu0 %v1912
    %v1914 = vpop.f32.mrf.mxu0
    %v1915 = vadd.f32 %v1880, %v1914
    %1916 = vdwg.mxu0
    %1917 = vmatpush.msra.mxu0 0.0
    %1918 = vmatpush.msra.mxu0 0.0
    %1919 = vmatpush.msra.mxu0 0.0
    %1920 = vmatpush.msra.mxu0 0.0
    %1921 = vmatpush.msra.mxu0 0.0
    %1922 = vmatpush.msra.mxu0 0.0
    %1923 = vmatpush.msra.mxu0 0.0
    %1924 = vmatpush.msra.mxu0 0.0
    %1925 = vmatpush.msra.mxu0 0.0
    %1926 = vmatpush.msra.mxu0 0.0
    %1927 = vmatpush.msra.mxu0 0.0
    %1928 = vmatpush.msra.mxu0 0.0
    %1929 = vmatpush.msra.mxu0 0.0
    %1930 = vmatpush.msra.mxu0 0.0
    %v1931 = vand.u32 %v471, 4294901760
    %v1932 = vsub.f32 %v471, %v1931
    %1933 = vmatpush.msra.mxu0 %v1932
    %v1934 = vand.u32 %v467, 4294901760
    %v1935 = vsub.f32 %v467, %v1934
    %1936 = vmatpush.msra.mxu0 %v1935
    %v1937 = vand.u32 %v1652, 4294901760
    %v1938 = vsub.f32 %v1652, %v1937
    %1939 = vmatmul.f32.gmra.mxu0 %v1938
    %v1940 = vpop.f32.mrf.mxu0
    %v1941 = vadd.f32 %v1911, %v1940
    %v1942 = vand.u32 %v1655, 4294901760
    %v1943 = vsub.f32 %v1655, %v1942
    %1944 = vmatmul.f32.gmra.mxu0 %v1943
    %v1945 = vpop.f32.mrf.mxu0
    %v1946 = vadd.f32 %v1915, %v1945
    %1947 = vdwg.mxu0
    %1948 = vmatpush.msra.mxu0 0.0
    %1949 = vmatpush.msra.mxu0 0.0
    %1950 = vmatpush.msra.mxu0 0.0
    %1951 = vmatpush.msra.mxu0 0.0
    %1952 = vmatpush.msra.mxu0 0.0
    %1953 = vmatpush.msra.mxu0 0.0
    %1954 = vmatpush.msra.mxu0 0.0
    %1955 = vmatpush.msra.mxu0 0.0
    %1956 = vmatpush.msra.mxu0 0.0
    %1957 = vmatpush.msra.mxu0 0.0
    %1958 = vmatpush.msra.mxu0 0.0
    %1959 = vmatpush.msra.mxu0 0.0
    %1960 = vmatpush.msra.mxu0 0.0
    %1961 = vmatpush.msra.mxu0 0.0
    %v1962 = vand.u32 %v471, 4294901760
    %1963 = vmatpush.msra.mxu0 %v1962
    %v1964 = vand.u32 %v467, 4294901760
    %1965 = vmatpush.msra.mxu0 %v1964
    %v1966 = vand.u32 %v1652, 4294901760
    %v1967 = vsub.f32 %v1652, %v1966
    %v1968 = vand.u32 %v1967, 4294901760
    %1969 = vmatmul.f32.gmra.mxu0 %v1968
    %v1970 = vpop.f32.mrf.mxu0
    %v1971 = vadd.f32 %v1941, %v1970
    %v1972 = vand.u32 %v1655, 4294901760
    %v1973 = vsub.f32 %v1655, %v1972
    %v1974 = vand.u32 %v1973, 4294901760
    %1975 = vmatmul.f32.gmra.mxu0 %v1974
    %v1976 = vpop.f32.mrf.mxu0
    %v1977 = vadd.f32 %v1946, %v1976
    %1978 = vdwg.mxu0
    %1979 = vmatpush.msra.mxu0 0.0
    %1980 = vmatpush.msra.mxu0 0.0
    %1981 = vmatpush.msra.mxu0 0.0
    %1982 = vmatpush.msra.mxu0 0.0
    %1983 = vmatpush.msra.mxu0 0.0
    %1984 = vmatpush.msra.mxu0 0.0
    %1985 = vmatpush.msra.mxu0 0.0
    %1986 = vmatpush.msra.mxu0 0.0
    %1987 = vmatpush.msra.mxu0 0.0
    %1988 = vmatpush.msra.mxu0 0.0
    %1989 = vmatpush.msra.mxu0 0.0
    %1990 = vmatpush.msra.mxu0 0.0
    %1991 = vmatpush.msra.mxu0 0.0
    %1992 = vmatpush.msra.mxu0 0.0
    %v1993 = vand.u32 %v471, 4294901760
    %v1994 = vsub.f32 %v471, %v1993
    %v1995 = vand.u32 %v1994, 4294901760
    %1996 = vmatpush.msra.mxu0 %v1995
    %v1997 = vand.u32 %v467, 4294901760
    %v1998 = vsub.f32 %v467, %v1997
    %v1999 = vand.u32 %v1998, 4294901760
    %2000 = vmatpush.msra.mxu0 %v1999
    %v2001 = vand.u32 %v1652, 4294901760
    %2002 = vmatmul.f32.gmra.mxu0 %v2001
    %v2003 = vpop.f32.mrf.mxu0
    %v2004 = vadd.f32 %v1971, %v2003
    %v2005 = vand.u32 %v1655, 4294901760
    %2006 = vmatmul.f32.gmra.mxu0 %v2005
    %v2007 = vpop.f32.mrf.mxu0
    %v2008 = vadd.f32 %v1977, %v2007
    %2009 = vdwg.mxu0
    %2010 = vmatpush.msra.mxu0 0.0
    %2011 = vmatpush.msra.mxu0 0.0
    %2012 = vmatpush.msra.mxu0 0.0
    %2013 = vmatpush.msra.mxu0 0.0
    %2014 = vmatpush.msra.mxu0 0.0
    %2015 = vmatpush.msra.mxu0 0.0
    %2016 = vmatpush.msra.mxu0 0.0
    %2017 = vmatpush.msra.mxu0 0.0
    %2018 = vmatpush.msra.mxu0 0.0
    %2019 = vmatpush.msra.mxu0 0.0
    %2020 = vmatpush.msra.mxu0 0.0
    %2021 = vmatpush.msra.mxu0 0.0
    %2022 = vmatpush.msra.mxu0 0.0
    %2023 = vmatpush.msra.mxu0 0.0
    %v2024 = vand.u32 %v471, 4294901760
    %2025 = vmatpush.msra.mxu0 %v2024
    %v2026 = vand.u32 %v467, 4294901760
    %2027 = vmatpush.msra.mxu0 %v2026
    %v2028 = vand.u32 %v1652, 4294901760
    %2029 = vmatmul.f32.gmra.mxu0 %v2028
    %v2030 = vpop.f32.mrf.mxu0
    %v2031 = vadd.f32 %v2004, %v2030
    %v2032 = vand.u32 %v1655, 4294901760
    %2033 = vmatmul.f32.gmra.mxu0 %v2032
    %v2034 = vpop.f32.mrf.mxu0
    %v2035 = vadd.f32 %v2008, %v2034
    %2036 = vdwg.mxu0
    %2037 = vmatpush.msra.mxu0 0.0
    %2038 = vmatpush.msra.mxu0 0.0
    %2039 = vmatpush.msra.mxu0 0.0
    %2040 = vmatpush.msra.mxu0 0.0
    %2041 = vmatpush.msra.mxu0 0.0
    %2042 = vmatpush.msra.mxu0 0.0
    %2043 = vmatpush.msra.mxu0 0.0
    %2044 = vmatpush.msra.mxu0 0.0
    %2045 = vmatpush.msra.mxu0 0.0
    %2046 = vmatpush.msra.mxu0 0.0
    %2047 = vmatpush.msra.mxu0 0.0
    %2048 = vmatpush.msra.mxu0 0.0
    %2049 = vmatpush.msra.mxu0 0.0
    %2050 = vmatpush.msra.mxu0 0.0
    %v2051 = vand.u32 %v667, 4294901760
    %2052 = vmatpush.msra.mxu0 %v2051
    %v2053 = vand.u32 %v663, 4294901760
    %2054 = vmatpush.msra.mxu0 %v2053
    %v2055 = vand.u32 %v1652, 4294901760
    %v2056 = vsub.f32 %v1652, %v2055
    %v2057 = vand.u32 %v2056, 4294901760
    %v2058 = vsub.f32 %v2056, %v2057
    %v2059 = vand.u32 %v2058, 4294901760
    %2060 = vmatmul.f32.gmra.mxu0 %v2059
    %v2061 = vpop.f32.mrf.mxu0
    %v2062 = vadd.f32 0.0, %v2061
    %v2063 = vand.u32 %v1655, 4294901760
    %v2064 = vsub.f32 %v1655, %v2063
    %v2065 = vand.u32 %v2064, 4294901760
    %v2066 = vsub.f32 %v2064, %v2065
    %v2067 = vand.u32 %v2066, 4294901760
    %2068 = vmatmul.f32.gmra.mxu0 %v2067
    %v2069 = vpop.f32.mrf.mxu0
    %v2070 = vadd.f32 0.0, %v2069
    %2071 = vdwg.mxu0
    %2072 = vmatpush.msra.mxu0 0.0
    %2073 = vmatpush.msra.mxu0 0.0
    %2074 = vmatpush.msra.mxu0 0.0
    %2075 = vmatpush.msra.mxu0 0.0
    %2076 = vmatpush.msra.mxu0 0.0
    %2077 = vmatpush.msra.mxu0 0.0
    %2078 = vmatpush.msra.mxu0 0.0
    %2079 = vmatpush.msra.mxu0 0.0
    %2080 = vmatpush.msra.mxu0 0.0
    %2081 = vmatpush.msra.mxu0 0.0
    %2082 = vmatpush.msra.mxu0 0.0
    %2083 = vmatpush.msra.mxu0 0.0
    %2084 = vmatpush.msra.mxu0 0.0
    %2085 = vmatpush.msra.mxu0 0.0
    %v2086 = vand.u32 %v667, 4294901760
    %v2087 = vsub.f32 %v667, %v2086
    %v2088 = vand.u32 %v2087, 4294901760
    %v2089 = vsub.f32 %v2087, %v2088
    %v2090 = vand.u32 %v2089, 4294901760
    %2091 = vmatpush.msra.mxu0 %v2090
    %v2092 = vand.u32 %v663, 4294901760
    %v2093 = vsub.f32 %v663, %v2092
    %v2094 = vand.u32 %v2093, 4294901760
    %v2095 = vsub.f32 %v2093, %v2094
    %v2096 = vand.u32 %v2095, 4294901760
    %2097 = vmatpush.msra.mxu0 %v2096
    %v2098 = vand.u32 %v1652, 4294901760
    %2099 = vmatmul.f32.gmra.mxu0 %v2098
    %v2100 = vpop.f32.mrf.mxu0
    %v2101 = vadd.f32 %v2062, %v2100
    %v2102 = vand.u32 %v1655, 4294901760
    %2103 = vmatmul.f32.gmra.mxu0 %v2102
    %v2104 = vpop.f32.mrf.mxu0
    %v2105 = vadd.f32 %v2070, %v2104
    %2106 = vdwg.mxu0
    %2107 = vmatpush.msra.mxu0 0.0
    %2108 = vmatpush.msra.mxu0 0.0
    %2109 = vmatpush.msra.mxu0 0.0
    %2110 = vmatpush.msra.mxu0 0.0
    %2111 = vmatpush.msra.mxu0 0.0
    %2112 = vmatpush.msra.mxu0 0.0
    %2113 = vmatpush.msra.mxu0 0.0
    %2114 = vmatpush.msra.mxu0 0.0
    %2115 = vmatpush.msra.mxu0 0.0
    %2116 = vmatpush.msra.mxu0 0.0
    %2117 = vmatpush.msra.mxu0 0.0
    %2118 = vmatpush.msra.mxu0 0.0
    %2119 = vmatpush.msra.mxu0 0.0
    %2120 = vmatpush.msra.mxu0 0.0
    %v2121 = vand.u32 %v667, 4294901760
    %v2122 = vsub.f32 %v667, %v2121
    %2123 = vmatpush.msra.mxu0 %v2122
    %v2124 = vand.u32 %v663, 4294901760
    %v2125 = vsub.f32 %v663, %v2124
    %2126 = vmatpush.msra.mxu0 %v2125
    %v2127 = vand.u32 %v1652, 4294901760
    %v2128 = vsub.f32 %v1652, %v2127
    %2129 = vmatmul.f32.gmra.mxu0 %v2128
    %v2130 = vpop.f32.mrf.mxu0
    %v2131 = vadd.f32 %v2101, %v2130
    %v2132 = vand.u32 %v1655, 4294901760
    %v2133 = vsub.f32 %v1655, %v2132
    %2134 = vmatmul.f32.gmra.mxu0 %v2133
    %v2135 = vpop.f32.mrf.mxu0
    %v2136 = vadd.f32 %v2105, %v2135
    %2137 = vdwg.mxu0
    %2138 = vmatpush.msra.mxu0 0.0
    %2139 = vmatpush.msra.mxu0 0.0
    %2140 = vmatpush.msra.mxu0 0.0
    %2141 = vmatpush.msra.mxu0 0.0
    %2142 = vmatpush.msra.mxu0 0.0
    %2143 = vmatpush.msra.mxu0 0.0
    %2144 = vmatpush.msra.mxu0 0.0
    %2145 = vmatpush.msra.mxu0 0.0
    %2146 = vmatpush.msra.mxu0 0.0
    %2147 = vmatpush.msra.mxu0 0.0
    %2148 = vmatpush.msra.mxu0 0.0
    %2149 = vmatpush.msra.mxu0 0.0
    %2150 = vmatpush.msra.mxu0 0.0
    %2151 = vmatpush.msra.mxu0 0.0
    %v2152 = vand.u32 %v667, 4294901760
    %2153 = vmatpush.msra.mxu0 %v2152
    %v2154 = vand.u32 %v663, 4294901760
    %2155 = vmatpush.msra.mxu0 %v2154
    %v2156 = vand.u32 %v1652, 4294901760
    %v2157 = vsub.f32 %v1652, %v2156
    %v2158 = vand.u32 %v2157, 4294901760
    %2159 = vmatmul.f32.gmra.mxu0 %v2158
    %v2160 = vpop.f32.mrf.mxu0
    %v2161 = vadd.f32 %v2131, %v2160
    %v2162 = vand.u32 %v1655, 4294901760
    %v2163 = vsub.f32 %v1655, %v2162
    %v2164 = vand.u32 %v2163, 4294901760
    %2165 = vmatmul.f32.gmra.mxu0 %v2164
    %v2166 = vpop.f32.mrf.mxu0
    %v2167 = vadd.f32 %v2136, %v2166
    %2168 = vdwg.mxu0
    %2169 = vmatpush.msra.mxu0 0.0
    %2170 = vmatpush.msra.mxu0 0.0
    %2171 = vmatpush.msra.mxu0 0.0
    %2172 = vmatpush.msra.mxu0 0.0
    %2173 = vmatpush.msra.mxu0 0.0
    %2174 = vmatpush.msra.mxu0 0.0
    %2175 = vmatpush.msra.mxu0 0.0
    %2176 = vmatpush.msra.mxu0 0.0
    %2177 = vmatpush.msra.mxu0 0.0
    %2178 = vmatpush.msra.mxu0 0.0
    %2179 = vmatpush.msra.mxu0 0.0
    %2180 = vmatpush.msra.mxu0 0.0
    %2181 = vmatpush.msra.mxu0 0.0
    %2182 = vmatpush.msra.mxu0 0.0
    %v2183 = vand.u32 %v667, 4294901760
    %v2184 = vsub.f32 %v667, %v2183
    %v2185 = vand.u32 %v2184, 4294901760
    %2186 = vmatpush.msra.mxu0 %v2185
    %v2187 = vand.u32 %v663, 4294901760
    %v2188 = vsub.f32 %v663, %v2187
    %v2189 = vand.u32 %v2188, 4294901760
    %2190 = vmatpush.msra.mxu0 %v2189
    %v2191 = vand.u32 %v1652, 4294901760
    %2192 = vmatmul.f32.gmra.mxu0 %v2191
    %v2193 = vpop.f32.mrf.mxu0
    %v2194 = vadd.f32 %v2161, %v2193
    %v2195 = vand.u32 %v1655, 4294901760
    %2196 = vmatmul.f32.gmra.mxu0 %v2195
    %v2197 = vpop.f32.mrf.mxu0
    %v2198 = vadd.f32 %v2167, %v2197
    %2199 = vdwg.mxu0
    %2200 = vmatpush.msra.mxu0 0.0
    %2201 = vmatpush.msra.mxu0 0.0
    %2202 = vmatpush.msra.mxu0 0.0
    %2203 = vmatpush.msra.mxu0 0.0
    %2204 = vmatpush.msra.mxu0 0.0
    %2205 = vmatpush.msra.mxu0 0.0
    %2206 = vmatpush.msra.mxu0 0.0
    %2207 = vmatpush.msra.mxu0 0.0
    %2208 = vmatpush.msra.mxu0 0.0
    %2209 = vmatpush.msra.mxu0 0.0
    %2210 = vmatpush.msra.mxu0 0.0
    %2211 = vmatpush.msra.mxu0 0.0
    %2212 = vmatpush.msra.mxu0 0.0
    %2213 = vmatpush.msra.mxu0 0.0
    %v2214 = vand.u32 %v667, 4294901760
    %2215 = vmatpush.msra.mxu0 %v2214
    %v2216 = vand.u32 %v663, 4294901760
    %2217 = vmatpush.msra.mxu0 %v2216
    %v2218 = vand.u32 %v1652, 4294901760
    %2219 = vmatmul.f32.gmra.mxu0 %v2218
    %v2220 = vpop.f32.mrf.mxu0
    %v2221 = vadd.f32 %v2194, %v2220
    %v2222 = vand.u32 %v1655, 4294901760
    %2223 = vmatmul.f32.gmra.mxu0 %v2222
    %v2224 = vpop.f32.mrf.mxu0
    %v2225 = vadd.f32 %v2198, %v2224
    %2226 = vdwg.mxu0
    %2227 = vmatpush.msra.mxu0 0.0
    %2228 = vmatpush.msra.mxu0 0.0
    %2229 = vmatpush.msra.mxu0 0.0
    %2230 = vmatpush.msra.mxu0 0.0
    %2231 = vmatpush.msra.mxu0 0.0
    %2232 = vmatpush.msra.mxu0 0.0
    %2233 = vmatpush.msra.mxu0 0.0
    %2234 = vmatpush.msra.mxu0 0.0
    %2235 = vmatpush.msra.mxu0 0.0
    %2236 = vmatpush.msra.mxu0 0.0
    %2237 = vmatpush.msra.mxu0 0.0
    %2238 = vmatpush.msra.mxu0 0.0
    %2239 = vmatpush.msra.mxu0 0.0
    %2240 = vmatpush.msra.mxu0 0.0
    %v2241 = vand.u32 %v863, 4294901760
    %2242 = vmatpush.msra.mxu0 %v2241
    %v2243 = vand.u32 %v859, 4294901760
    %2244 = vmatpush.msra.mxu0 %v2243
    %v2245 = vand.u32 %v1652, 4294901760
    %v2246 = vsub.f32 %v1652, %v2245
    %v2247 = vand.u32 %v2246, 4294901760
    %v2248 = vsub.f32 %v2246, %v2247
    %v2249 = vand.u32 %v2248, 4294901760
    %2250 = vmatmul.f32.gmra.mxu0 %v2249
    %v2251 = vpop.f32.mrf.mxu0
    %v2252 = vadd.f32 0.0, %v2251
    %v2253 = vand.u32 %v1655, 4294901760
    %v2254 = vsub.f32 %v1655, %v2253
    %v2255 = vand.u32 %v2254, 4294901760
    %v2256 = vsub.f32 %v2254, %v2255
    %v2257 = vand.u32 %v2256, 4294901760
    %2258 = vmatmul.f32.gmra.mxu0 %v2257
    %v2259 = vpop.f32.mrf.mxu0
    %v2260 = vadd.f32 0.0, %v2259
    %2261 = vdwg.mxu0
    %2262 = vmatpush.msra.mxu0 0.0
    %2263 = vmatpush.msra.mxu0 0.0
    %2264 = vmatpush.msra.mxu0 0.0
    %2265 = vmatpush.msra.mxu0 0.0
    %2266 = vmatpush.msra.mxu0 0.0
    %2267 = vmatpush.msra.mxu0 0.0
    %2268 = vmatpush.msra.mxu0 0.0
    %2269 = vmatpush.msra.mxu0 0.0
    %2270 = vmatpush.msra.mxu0 0.0
    %2271 = vmatpush.msra.mxu0 0.0
    %2272 = vmatpush.msra.mxu0 0.0
    %2273 = vmatpush.msra.mxu0 0.0
    %2274 = vmatpush.msra.mxu0 0.0
    %2275 = vmatpush.msra.mxu0 0.0
    %v2276 = vand.u32 %v863, 4294901760
    %v2277 = vsub.f32 %v863, %v2276
    %v2278 = vand.u32 %v2277, 4294901760
    %v2279 = vsub.f32 %v2277, %v2278
    %v2280 = vand.u32 %v2279, 4294901760
    %2281 = vmatpush.msra.mxu0 %v2280
    %v2282 = vand.u32 %v859, 4294901760
    %v2283 = vsub.f32 %v859, %v2282
    %v2284 = vand.u32 %v2283, 4294901760
    %v2285 = vsub.f32 %v2283, %v2284
    %v2286 = vand.u32 %v2285, 4294901760
    %2287 = vmatpush.msra.mxu0 %v2286
    %v2288 = vand.u32 %v1652, 4294901760
    %2289 = vmatmul.f32.gmra.mxu0 %v2288
    %v2290 = vpop.f32.mrf.mxu0
    %v2291 = vadd.f32 %v2252, %v2290
    %v2292 = vand.u32 %v1655, 4294901760
    %2293 = vmatmul.f32.gmra.mxu0 %v2292
    %v2294 = vpop.f32.mrf.mxu0
    %v2295 = vadd.f32 %v2260, %v2294
    %2296 = vdwg.mxu0
    %2297 = vmatpush.msra.mxu0 0.0
    %2298 = vmatpush.msra.mxu0 0.0
    %2299 = vmatpush.msra.mxu0 0.0
    %2300 = vmatpush.msra.mxu0 0.0
    %2301 = vmatpush.msra.mxu0 0.0
    %2302 = vmatpush.msra.mxu0 0.0
    %2303 = vmatpush.msra.mxu0 0.0
    %2304 = vmatpush.msra.mxu0 0.0
    %2305 = vmatpush.msra.mxu0 0.0
    %2306 = vmatpush.msra.mxu0 0.0
    %2307 = vmatpush.msra.mxu0 0.0
    %2308 = vmatpush.msra.mxu0 0.0
    %2309 = vmatpush.msra.mxu0 0.0
    %2310 = vmatpush.msra.mxu0 0.0
    %v2311 = vand.u32 %v863, 4294901760
    %v2312 = vsub.f32 %v863, %v2311
    %2313 = vmatpush.msra.mxu0 %v2312
    %v2314 = vand.u32 %v859, 4294901760
    %v2315 = vsub.f32 %v859, %v2314
    %2316 = vmatpush.msra.mxu0 %v2315
    %v2317 = vand.u32 %v1652, 4294901760
    %v2318 = vsub.f32 %v1652, %v2317
    %2319 = vmatmul.f32.gmra.mxu0 %v2318
    %v2320 = vpop.f32.mrf.mxu0
    %v2321 = vadd.f32 %v2291, %v2320
    %v2322 = vand.u32 %v1655, 4294901760
    %v2323 = vsub.f32 %v1655, %v2322
    %2324 = vmatmul.f32.gmra.mxu0 %v2323
    %v2325 = vpop.f32.mrf.mxu0
    %v2326 = vadd.f32 %v2295, %v2325
    %2327 = vdwg.mxu0
    %2328 = vmatpush.msra.mxu0 0.0
    %2329 = vmatpush.msra.mxu0 0.0
    %2330 = vmatpush.msra.mxu0 0.0
    %2331 = vmatpush.msra.mxu0 0.0
    %2332 = vmatpush.msra.mxu0 0.0
    %2333 = vmatpush.msra.mxu0 0.0
    %2334 = vmatpush.msra.mxu0 0.0
    %2335 = vmatpush.msra.mxu0 0.0
    %2336 = vmatpush.msra.mxu0 0.0
    %2337 = vmatpush.msra.mxu0 0.0
    %2338 = vmatpush.msra.mxu0 0.0
    %2339 = vmatpush.msra.mxu0 0.0
    %2340 = vmatpush.msra.mxu0 0.0
    %2341 = vmatpush.msra.mxu0 0.0
    %v2342 = vand.u32 %v863, 4294901760
    %2343 = vmatpush.msra.mxu0 %v2342
    %v2344 = vand.u32 %v859, 4294901760
    %2345 = vmatpush.msra.mxu0 %v2344
    %v2346 = vand.u32 %v1652, 4294901760
    %v2347 = vsub.f32 %v1652, %v2346
    %v2348 = vand.u32 %v2347, 4294901760
    %2349 = vmatmul.f32.gmra.mxu0 %v2348
    %v2350 = vpop.f32.mrf.mxu0
    %v2351 = vadd.f32 %v2321, %v2350
    %v2352 = vand.u32 %v1655, 4294901760
    %v2353 = vsub.f32 %v1655, %v2352
    %v2354 = vand.u32 %v2353, 4294901760
    %2355 = vmatmul.f32.gmra.mxu0 %v2354
    %v2356 = vpop.f32.mrf.mxu0
    %v2357 = vadd.f32 %v2326, %v2356
    %2358 = vdwg.mxu0
    %2359 = vmatpush.msra.mxu0 0.0
    %2360 = vmatpush.msra.mxu0 0.0
    %2361 = vmatpush.msra.mxu0 0.0
    %2362 = vmatpush.msra.mxu0 0.0
    %2363 = vmatpush.msra.mxu0 0.0
    %2364 = vmatpush.msra.mxu0 0.0
    %2365 = vmatpush.msra.mxu0 0.0
    %2366 = vmatpush.msra.mxu0 0.0
    %2367 = vmatpush.msra.mxu0 0.0
    %2368 = vmatpush.msra.mxu0 0.0
    %2369 = vmatpush.msra.mxu0 0.0
    %2370 = vmatpush.msra.mxu0 0.0
    %2371 = vmatpush.msra.mxu0 0.0
    %2372 = vmatpush.msra.mxu0 0.0
    %v2373 = vand.u32 %v863, 4294901760
    %v2374 = vsub.f32 %v863, %v2373
    %v2375 = vand.u32 %v2374, 4294901760
    %2376 = vmatpush.msra.mxu0 %v2375
    %v2377 = vand.u32 %v859, 4294901760
    %v2378 = vsub.f32 %v859, %v2377
    %v2379 = vand.u32 %v2378, 4294901760
    %2380 = vmatpush.msra.mxu0 %v2379
    %v2381 = vand.u32 %v1652, 4294901760
    %2382 = vmatmul.f32.gmra.mxu0 %v2381
    %v2383 = vpop.f32.mrf.mxu0
    %v2384 = vadd.f32 %v2351, %v2383
    %v2385 = vand.u32 %v1655, 4294901760
    %2386 = vmatmul.f32.gmra.mxu0 %v2385
    %v2387 = vpop.f32.mrf.mxu0
    %v2388 = vadd.f32 %v2357, %v2387
    %2389 = vdwg.mxu0
    %2390 = vmatpush.msra.mxu0 0.0
    %2391 = vmatpush.msra.mxu0 0.0
    %2392 = vmatpush.msra.mxu0 0.0
    %2393 = vmatpush.msra.mxu0 0.0
    %2394 = vmatpush.msra.mxu0 0.0
    %2395 = vmatpush.msra.mxu0 0.0
    %2396 = vmatpush.msra.mxu0 0.0
    %2397 = vmatpush.msra.mxu0 0.0
    %2398 = vmatpush.msra.mxu0 0.0
    %2399 = vmatpush.msra.mxu0 0.0
    %2400 = vmatpush.msra.mxu0 0.0
    %2401 = vmatpush.msra.mxu0 0.0
    %2402 = vmatpush.msra.mxu0 0.0
    %2403 = vmatpush.msra.mxu0 0.0
    %v2404 = vand.u32 %v863, 4294901760
    %2405 = vmatpush.msra.mxu0 %v2404
    %v2406 = vand.u32 %v859, 4294901760
    %2407 = vmatpush.msra.mxu0 %v2406
    %v2408 = vand.u32 %v1652, 4294901760
    %2409 = vmatmul.f32.gmra.mxu0 %v2408
    %v2410 = vpop.f32.mrf.mxu0
    %v2411 = vadd.f32 %v2384, %v2410
    %v2412 = vand.u32 %v1655, 4294901760
    %2413 = vmatmul.f32.gmra.mxu0 %v2412
    %v2414 = vpop.f32.mrf.mxu0
    %v2415 = vadd.f32 %v2388, %v2414
    %2416 = vdwg.mxu0
    %2417 = vmatpush.msra.mxu0 0.0
    %2418 = vmatpush.msra.mxu0 0.0
    %2419 = vmatpush.msra.mxu0 0.0
    %2420 = vmatpush.msra.mxu0 0.0
    %2421 = vmatpush.msra.mxu0 0.0
    %2422 = vmatpush.msra.mxu0 0.0
    %2423 = vmatpush.msra.mxu0 0.0
    %2424 = vmatpush.msra.mxu0 0.0
    %2425 = vmatpush.msra.mxu0 0.0
    %2426 = vmatpush.msra.mxu0 0.0
    %2427 = vmatpush.msra.mxu0 0.0
    %2428 = vmatpush.msra.mxu0 0.0
    %2429 = vmatpush.msra.mxu0 0.0
    %2430 = vmatpush.msra.mxu0 0.0
    %v2431 = vand.u32 %v1059, 4294901760
    %2432 = vmatpush.msra.mxu0 %v2431
    %v2433 = vand.u32 %v1055, 4294901760
    %2434 = vmatpush.msra.mxu0 %v2433
    %v2435 = vand.u32 %v1652, 4294901760
    %v2436 = vsub.f32 %v1652, %v2435
    %v2437 = vand.u32 %v2436, 4294901760
    %v2438 = vsub.f32 %v2436, %v2437
    %v2439 = vand.u32 %v2438, 4294901760
    %2440 = vmatmul.f32.gmra.mxu0 %v2439
    %v2441 = vpop.f32.mrf.mxu0
    %v2442 = vadd.f32 0.0, %v2441
    %v2443 = vand.u32 %v1655, 4294901760
    %v2444 = vsub.f32 %v1655, %v2443
    %v2445 = vand.u32 %v2444, 4294901760
    %v2446 = vsub.f32 %v2444, %v2445
    %v2447 = vand.u32 %v2446, 4294901760
    %2448 = vmatmul.f32.gmra.mxu0 %v2447
    %v2449 = vpop.f32.mrf.mxu0
    %v2450 = vadd.f32 0.0, %v2449
    %2451 = vdwg.mxu0
    %2452 = vmatpush.msra.mxu0 0.0
    %2453 = vmatpush.msra.mxu0 0.0
    %2454 = vmatpush.msra.mxu0 0.0
    %2455 = vmatpush.msra.mxu0 0.0
    %2456 = vmatpush.msra.mxu0 0.0
    %2457 = vmatpush.msra.mxu0 0.0
    %2458 = vmatpush.msra.mxu0 0.0
    %2459 = vmatpush.msra.mxu0 0.0
    %2460 = vmatpush.msra.mxu0 0.0
    %2461 = vmatpush.msra.mxu0 0.0
    %2462 = vmatpush.msra.mxu0 0.0
    %2463 = vmatpush.msra.mxu0 0.0
    %2464 = vmatpush.msra.mxu0 0.0
    %2465 = vmatpush.msra.mxu0 0.0
    %v2466 = vand.u32 %v1059, 4294901760
    %v2467 = vsub.f32 %v1059, %v2466
    %v2468 = vand.u32 %v2467, 4294901760
    %v2469 = vsub.f32 %v2467, %v2468
    %v2470 = vand.u32 %v2469, 4294901760
    %2471 = vmatpush.msra.mxu0 %v2470
    %v2472 = vand.u32 %v1055, 4294901760
    %v2473 = vsub.f32 %v1055, %v2472
    %v2474 = vand.u32 %v2473, 4294901760
    %v2475 = vsub.f32 %v2473, %v2474
    %v2476 = vand.u32 %v2475, 4294901760
    %2477 = vmatpush.msra.mxu0 %v2476
    %v2478 = vand.u32 %v1652, 4294901760
    %2479 = vmatmul.f32.gmra.mxu0 %v2478
    %v2480 = vpop.f32.mrf.mxu0
    %v2481 = vadd.f32 %v2442, %v2480
    %v2482 = vand.u32 %v1655, 4294901760
    %2483 = vmatmul.f32.gmra.mxu0 %v2482
    %v2484 = vpop.f32.mrf.mxu0
    %v2485 = vadd.f32 %v2450, %v2484
    %2486 = vdwg.mxu0
    %2487 = vmatpush.msra.mxu0 0.0
    %2488 = vmatpush.msra.mxu0 0.0
    %2489 = vmatpush.msra.mxu0 0.0
    %2490 = vmatpush.msra.mxu0 0.0
    %2491 = vmatpush.msra.mxu0 0.0
    %2492 = vmatpush.msra.mxu0 0.0
    %2493 = vmatpush.msra.mxu0 0.0
    %2494 = vmatpush.msra.mxu0 0.0
    %2495 = vmatpush.msra.mxu0 0.0
    %2496 = vmatpush.msra.mxu0 0.0
    %2497 = vmatpush.msra.mxu0 0.0
    %2498 = vmatpush.msra.mxu0 0.0
    %2499 = vmatpush.msra.mxu0 0.0
    %2500 = vmatpush.msra.mxu0 0.0
    %v2501 = vand.u32 %v1059, 4294901760
    %v2502 = vsub.f32 %v1059, %v2501
    %2503 = vmatpush.msra.mxu0 %v2502
    %v2504 = vand.u32 %v1055, 4294901760
    %v2505 = vsub.f32 %v1055, %v2504
    %2506 = vmatpush.msra.mxu0 %v2505
    %v2507 = vand.u32 %v1652, 4294901760
    %v2508 = vsub.f32 %v1652, %v2507
    %2509 = vmatmul.f32.gmra.mxu0 %v2508
    %v2510 = vpop.f32.mrf.mxu0
    %v2511 = vadd.f32 %v2481, %v2510
    %v2512 = vand.u32 %v1655, 4294901760
    %v2513 = vsub.f32 %v1655, %v2512
    %2514 = vmatmul.f32.gmra.mxu0 %v2513
    %v2515 = vpop.f32.mrf.mxu0
    %v2516 = vadd.f32 %v2485, %v2515
    %2517 = vdwg.mxu0
    %2518 = vmatpush.msra.mxu0 0.0
    %2519 = vmatpush.msra.mxu0 0.0
    %2520 = vmatpush.msra.mxu0 0.0
    %2521 = vmatpush.msra.mxu0 0.0
    %2522 = vmatpush.msra.mxu0 0.0
    %2523 = vmatpush.msra.mxu0 0.0
    %2524 = vmatpush.msra.mxu0 0.0
    %2525 = vmatpush.msra.mxu0 0.0
    %2526 = vmatpush.msra.mxu0 0.0
    %2527 = vmatpush.msra.mxu0 0.0
    %2528 = vmatpush.msra.mxu0 0.0
    %2529 = vmatpush.msra.mxu0 0.0
    %2530 = vmatpush.msra.mxu0 0.0
    %2531 = vmatpush.msra.mxu0 0.0
    %v2532 = vand.u32 %v1059, 4294901760
    %2533 = vmatpush.msra.mxu0 %v2532
    %v2534 = vand.u32 %v1055, 4294901760
    %2535 = vmatpush.msra.mxu0 %v2534
    %v2536 = vand.u32 %v1652, 4294901760
    %v2537 = vsub.f32 %v1652, %v2536
    %v2538 = vand.u32 %v2537, 4294901760
    %2539 = vmatmul.f32.gmra.mxu0 %v2538
    %v2540 = vpop.f32.mrf.mxu0
    %v2541 = vadd.f32 %v2511, %v2540
    %v2542 = vand.u32 %v1655, 4294901760
    %v2543 = vsub.f32 %v1655, %v2542
    %v2544 = vand.u32 %v2543, 4294901760
    %2545 = vmatmul.f32.gmra.mxu0 %v2544
    %v2546 = vpop.f32.mrf.mxu0
    %v2547 = vadd.f32 %v2516, %v2546
    %2548 = vdwg.mxu0
    %2549 = vmatpush.msra.mxu0 0.0
    %2550 = vmatpush.msra.mxu0 0.0
    %2551 = vmatpush.msra.mxu0 0.0
    %2552 = vmatpush.msra.mxu0 0.0
    %2553 = vmatpush.msra.mxu0 0.0
    %2554 = vmatpush.msra.mxu0 0.0
    %2555 = vmatpush.msra.mxu0 0.0
    %2556 = vmatpush.msra.mxu0 0.0
    %2557 = vmatpush.msra.mxu0 0.0
    %2558 = vmatpush.msra.mxu0 0.0
    %2559 = vmatpush.msra.mxu0 0.0
    %2560 = vmatpush.msra.mxu0 0.0
    %2561 = vmatpush.msra.mxu0 0.0
    %2562 = vmatpush.msra.mxu0 0.0
    %v2563 = vand.u32 %v1059, 4294901760
    %v2564 = vsub.f32 %v1059, %v2563
    %v2565 = vand.u32 %v2564, 4294901760
    %2566 = vmatpush.msra.mxu0 %v2565
    %v2567 = vand.u32 %v1055, 4294901760
    %v2568 = vsub.f32 %v1055, %v2567
    %v2569 = vand.u32 %v2568, 4294901760
    %2570 = vmatpush.msra.mxu0 %v2569
    %v2571 = vand.u32 %v1652, 4294901760
    %2572 = vmatmul.f32.gmra.mxu0 %v2571
    %v2573 = vpop.f32.mrf.mxu0
    %v2574 = vadd.f32 %v2541, %v2573
    %v2575 = vand.u32 %v1655, 4294901760
    %2576 = vmatmul.f32.gmra.mxu0 %v2575
    %v2577 = vpop.f32.mrf.mxu0
    %v2578 = vadd.f32 %v2547, %v2577
    %2579 = vdwg.mxu0
    %2580 = vmatpush.msra.mxu0 0.0
    %2581 = vmatpush.msra.mxu0 0.0
    %2582 = vmatpush.msra.mxu0 0.0
    %2583 = vmatpush.msra.mxu0 0.0
    %2584 = vmatpush.msra.mxu0 0.0
    %2585 = vmatpush.msra.mxu0 0.0
    %2586 = vmatpush.msra.mxu0 0.0
    %2587 = vmatpush.msra.mxu0 0.0
    %2588 = vmatpush.msra.mxu0 0.0
    %2589 = vmatpush.msra.mxu0 0.0
    %2590 = vmatpush.msra.mxu0 0.0
    %2591 = vmatpush.msra.mxu0 0.0
    %2592 = vmatpush.msra.mxu0 0.0
    %2593 = vmatpush.msra.mxu0 0.0
    %v2594 = vand.u32 %v1059, 4294901760
    %2595 = vmatpush.msra.mxu0 %v2594
    %v2596 = vand.u32 %v1055, 4294901760
    %2597 = vmatpush.msra.mxu0 %v2596
    %v2598 = vand.u32 %v1652, 4294901760
    %2599 = vmatmul.f32.gmra.mxu0 %v2598
    %v2600 = vpop.f32.mrf.mxu0
    %v2601 = vadd.f32 %v2574, %v2600
    %v2602 = vand.u32 %v1655, 4294901760
    %2603 = vmatmul.f32.gmra.mxu0 %v2602
    %v2604 = vpop.f32.mrf.mxu0
    %v2605 = vadd.f32 %v2578, %v2604
    %2606 = vdwg.mxu0
    %2607 = vmatpush.msra.mxu0 0.0
    %2608 = vmatpush.msra.mxu0 0.0
    %2609 = vmatpush.msra.mxu0 0.0
    %2610 = vmatpush.msra.mxu0 0.0
    %2611 = vmatpush.msra.mxu0 0.0
    %2612 = vmatpush.msra.mxu0 0.0
    %2613 = vmatpush.msra.mxu0 0.0
    %2614 = vmatpush.msra.mxu0 0.0
    %2615 = vmatpush.msra.mxu0 0.0
    %2616 = vmatpush.msra.mxu0 0.0
    %2617 = vmatpush.msra.mxu0 0.0
    %2618 = vmatpush.msra.mxu0 0.0
    %2619 = vmatpush.msra.mxu0 0.0
    %2620 = vmatpush.msra.mxu0 0.0
    %v2621 = vand.u32 %v1255, 4294901760
    %2622 = vmatpush.msra.mxu0 %v2621
    %v2623 = vand.u32 %v1251, 4294901760
    %2624 = vmatpush.msra.mxu0 %v2623
    %v2625 = vand.u32 %v1652, 4294901760
    %v2626 = vsub.f32 %v1652, %v2625
    %v2627 = vand.u32 %v2626, 4294901760
    %v2628 = vsub.f32 %v2626, %v2627
    %v2629 = vand.u32 %v2628, 4294901760
    %2630 = vmatmul.f32.gmra.mxu0 %v2629
    %v2631 = vpop.f32.mrf.mxu0
    %v2632 = vadd.f32 0.0, %v2631
    %v2633 = vand.u32 %v1655, 4294901760
    %v2634 = vsub.f32 %v1655, %v2633
    %v2635 = vand.u32 %v2634, 4294901760
    %v2636 = vsub.f32 %v2634, %v2635
    %v2637 = vand.u32 %v2636, 4294901760
    %2638 = vmatmul.f32.gmra.mxu0 %v2637
    %v2639 = vpop.f32.mrf.mxu0
    %v2640 = vadd.f32 0.0, %v2639
    %2641 = vdwg.mxu0
    %2642 = vmatpush.msra.mxu0 0.0
    %2643 = vmatpush.msra.mxu0 0.0
    %2644 = vmatpush.msra.mxu0 0.0
    %2645 = vmatpush.msra.mxu0 0.0
    %2646 = vmatpush.msra.mxu0 0.0
    %2647 = vmatpush.msra.mxu0 0.0
    %2648 = vmatpush.msra.mxu0 0.0
    %2649 = vmatpush.msra.mxu0 0.0
    %2650 = vmatpush.msra.mxu0 0.0
    %2651 = vmatpush.msra.mxu0 0.0
    %2652 = vmatpush.msra.mxu0 0.0
    %2653 = vmatpush.msra.mxu0 0.0
    %2654 = vmatpush.msra.mxu0 0.0
    %2655 = vmatpush.msra.mxu0 0.0
    %v2656 = vand.u32 %v1255, 4294901760
    %v2657 = vsub.f32 %v1255, %v2656
    %v2658 = vand.u32 %v2657, 4294901760
    %v2659 = vsub.f32 %v2657, %v2658
    %v2660 = vand.u32 %v2659, 4294901760
    %2661 = vmatpush.msra.mxu0 %v2660
    %v2662 = vand.u32 %v1251, 4294901760
    %v2663 = vsub.f32 %v1251, %v2662
    %v2664 = vand.u32 %v2663, 4294901760
    %v2665 = vsub.f32 %v2663, %v2664
    %v2666 = vand.u32 %v2665, 4294901760
    %2667 = vmatpush.msra.mxu0 %v2666
    %v2668 = vand.u32 %v1652, 4294901760
    %2669 = vmatmul.f32.gmra.mxu0 %v2668
    %v2670 = vpop.f32.mrf.mxu0
    %v2671 = vadd.f32 %v2632, %v2670
    %v2672 = vand.u32 %v1655, 4294901760
    %2673 = vmatmul.f32.gmra.mxu0 %v2672
    %v2674 = vpop.f32.mrf.mxu0
    %v2675 = vadd.f32 %v2640, %v2674
    %2676 = vdwg.mxu0
    %2677 = vmatpush.msra.mxu0 0.0
    %2678 = vmatpush.msra.mxu0 0.0
    %2679 = vmatpush.msra.mxu0 0.0
    %2680 = vmatpush.msra.mxu0 0.0
    %2681 = vmatpush.msra.mxu0 0.0
    %2682 = vmatpush.msra.mxu0 0.0
    %2683 = vmatpush.msra.mxu0 0.0
    %2684 = vmatpush.msra.mxu0 0.0
    %2685 = vmatpush.msra.mxu0 0.0
    %2686 = vmatpush.msra.mxu0 0.0
    %2687 = vmatpush.msra.mxu0 0.0
    %2688 = vmatpush.msra.mxu0 0.0
    %2689 = vmatpush.msra.mxu0 0.0
    %2690 = vmatpush.msra.mxu0 0.0
    %v2691 = vand.u32 %v1255, 4294901760
    %v2692 = vsub.f32 %v1255, %v2691
    %2693 = vmatpush.msra.mxu0 %v2692
    %v2694 = vand.u32 %v1251, 4294901760
    %v2695 = vsub.f32 %v1251, %v2694
    %2696 = vmatpush.msra.mxu0 %v2695
    %v2697 = vand.u32 %v1652, 4294901760
    %v2698 = vsub.f32 %v1652, %v2697
    %2699 = vmatmul.f32.gmra.mxu0 %v2698
    %v2700 = vpop.f32.mrf.mxu0
    %v2701 = vadd.f32 %v2671, %v2700
    %v2702 = vand.u32 %v1655, 4294901760
    %v2703 = vsub.f32 %v1655, %v2702
    %2704 = vmatmul.f32.gmra.mxu0 %v2703
    %v2705 = vpop.f32.mrf.mxu0
    %v2706 = vadd.f32 %v2675, %v2705
    %2707 = vdwg.mxu0
    %2708 = vmatpush.msra.mxu0 0.0
    %2709 = vmatpush.msra.mxu0 0.0
    %2710 = vmatpush.msra.mxu0 0.0
    %2711 = vmatpush.msra.mxu0 0.0
    %2712 = vmatpush.msra.mxu0 0.0
    %2713 = vmatpush.msra.mxu0 0.0
    %2714 = vmatpush.msra.mxu0 0.0
    %2715 = vmatpush.msra.mxu0 0.0
    %2716 = vmatpush.msra.mxu0 0.0
    %2717 = vmatpush.msra.mxu0 0.0
    %2718 = vmatpush.msra.mxu0 0.0
    %2719 = vmatpush.msra.mxu0 0.0
    %2720 = vmatpush.msra.mxu0 0.0
    %2721 = vmatpush.msra.mxu0 0.0
    %v2722 = vand.u32 %v1255, 4294901760
    %2723 = vmatpush.msra.mxu0 %v2722
    %v2724 = vand.u32 %v1251, 4294901760
    %2725 = vmatpush.msra.mxu0 %v2724
    %v2726 = vand.u32 %v1652, 4294901760
    %v2727 = vsub.f32 %v1652, %v2726
    %v2728 = vand.u32 %v2727, 4294901760
    %2729 = vmatmul.f32.gmra.mxu0 %v2728
    %v2730 = vpop.f32.mrf.mxu0
    %v2731 = vadd.f32 %v2701, %v2730
    %v2732 = vand.u32 %v1655, 4294901760
    %v2733 = vsub.f32 %v1655, %v2732
    %v2734 = vand.u32 %v2733, 4294901760
    %2735 = vmatmul.f32.gmra.mxu0 %v2734
    %v2736 = vpop.f32.mrf.mxu0
    %v2737 = vadd.f32 %v2706, %v2736
    %2738 = vdwg.mxu0
    %2739 = vmatpush.msra.mxu0 0.0
    %2740 = vmatpush.msra.mxu0 0.0
    %2741 = vmatpush.msra.mxu0 0.0
    %2742 = vmatpush.msra.mxu0 0.0
    %2743 = vmatpush.msra.mxu0 0.0
    %2744 = vmatpush.msra.mxu0 0.0
    %2745 = vmatpush.msra.mxu0 0.0
    %2746 = vmatpush.msra.mxu0 0.0
    %2747 = vmatpush.msra.mxu0 0.0
    %2748 = vmatpush.msra.mxu0 0.0
    %2749 = vmatpush.msra.mxu0 0.0
    %2750 = vmatpush.msra.mxu0 0.0
    %2751 = vmatpush.msra.mxu0 0.0
    %2752 = vmatpush.msra.mxu0 0.0
    %v2753 = vand.u32 %v1255, 4294901760
    %v2754 = vsub.f32 %v1255, %v2753
    %v2755 = vand.u32 %v2754, 4294901760
    %2756 = vmatpush.msra.mxu0 %v2755
    %v2757 = vand.u32 %v1251, 4294901760
    %v2758 = vsub.f32 %v1251, %v2757
    %v2759 = vand.u32 %v2758, 4294901760
    %2760 = vmatpush.msra.mxu0 %v2759
    %v2761 = vand.u32 %v1652, 4294901760
    %2762 = vmatmul.f32.gmra.mxu0 %v2761
    %v2763 = vpop.f32.mrf.mxu0
    %v2764 = vadd.f32 %v2731, %v2763
    %v2765 = vand.u32 %v1655, 4294901760
    %2766 = vmatmul.f32.gmra.mxu0 %v2765
    %v2767 = vpop.f32.mrf.mxu0
    %v2768 = vadd.f32 %v2737, %v2767
    %2769 = vdwg.mxu0
    %2770 = vmatpush.msra.mxu0 0.0
    %2771 = vmatpush.msra.mxu0 0.0
    %2772 = vmatpush.msra.mxu0 0.0
    %2773 = vmatpush.msra.mxu0 0.0
    %2774 = vmatpush.msra.mxu0 0.0
    %2775 = vmatpush.msra.mxu0 0.0
    %2776 = vmatpush.msra.mxu0 0.0
    %2777 = vmatpush.msra.mxu0 0.0
    %2778 = vmatpush.msra.mxu0 0.0
    %2779 = vmatpush.msra.mxu0 0.0
    %2780 = vmatpush.msra.mxu0 0.0
    %2781 = vmatpush.msra.mxu0 0.0
    %2782 = vmatpush.msra.mxu0 0.0
    %2783 = vmatpush.msra.mxu0 0.0
    %v2784 = vand.u32 %v1255, 4294901760
    %2785 = vmatpush.msra.mxu0 %v2784
    %v2786 = vand.u32 %v1251, 4294901760
    %2787 = vmatpush.msra.mxu0 %v2786
    %v2788 = vand.u32 %v1652, 4294901760
    %2789 = vmatmul.f32.gmra.mxu0 %v2788
    %v2790 = vpop.f32.mrf.mxu0
    %v2791 = vadd.f32 %v2764, %v2790
    %v2792 = vand.u32 %v1655, 4294901760
    %2793 = vmatmul.f32.gmra.mxu0 %v2792
    %v2794 = vpop.f32.mrf.mxu0
    %v2795 = vadd.f32 %v2768, %v2794
    %2796 = vdwg.mxu0
    %2797 = vmatpush.msra.mxu0 0.0
    %2798 = vmatpush.msra.mxu0 0.0
    %2799 = vmatpush.msra.mxu0 0.0
    %2800 = vmatpush.msra.mxu0 0.0
    %2801 = vmatpush.msra.mxu0 0.0
    %2802 = vmatpush.msra.mxu0 0.0
    %2803 = vmatpush.msra.mxu0 0.0
    %2804 = vmatpush.msra.mxu0 0.0
    %2805 = vmatpush.msra.mxu0 0.0
    %2806 = vmatpush.msra.mxu0 0.0
    %2807 = vmatpush.msra.mxu0 0.0
    %2808 = vmatpush.msra.mxu0 0.0
    %2809 = vmatpush.msra.mxu0 0.0
    %2810 = vmatpush.msra.mxu0 0.0
    %v2811 = vand.u32 %v1451, 4294901760
    %2812 = vmatpush.msra.mxu0 %v2811
    %v2813 = vand.u32 %v1447, 4294901760
    %2814 = vmatpush.msra.mxu0 %v2813
    %v2815 = vand.u32 %v1652, 4294901760
    %v2816 = vsub.f32 %v1652, %v2815
    %v2817 = vand.u32 %v2816, 4294901760
    %v2818 = vsub.f32 %v2816, %v2817
    %v2819 = vand.u32 %v2818, 4294901760
    %2820 = vmatmul.f32.gmra.mxu0 %v2819
    %v2821 = vpop.f32.mrf.mxu0
    %v2822 = vadd.f32 0.0, %v2821
    %v2823 = vand.u32 %v1655, 4294901760
    %v2824 = vsub.f32 %v1655, %v2823
    %v2825 = vand.u32 %v2824, 4294901760
    %v2826 = vsub.f32 %v2824, %v2825
    %v2827 = vand.u32 %v2826, 4294901760
    %2828 = vmatmul.f32.gmra.mxu0 %v2827
    %v2829 = vpop.f32.mrf.mxu0
    %v2830 = vadd.f32 0.0, %v2829
    %2831 = vdwg.mxu0
    %2832 = vmatpush.msra.mxu0 0.0
    %2833 = vmatpush.msra.mxu0 0.0
    %2834 = vmatpush.msra.mxu0 0.0
    %2835 = vmatpush.msra.mxu0 0.0
    %2836 = vmatpush.msra.mxu0 0.0
    %2837 = vmatpush.msra.mxu0 0.0
    %2838 = vmatpush.msra.mxu0 0.0
    %2839 = vmatpush.msra.mxu0 0.0
    %2840 = vmatpush.msra.mxu0 0.0
    %2841 = vmatpush.msra.mxu0 0.0
    %2842 = vmatpush.msra.mxu0 0.0
    %2843 = vmatpush.msra.mxu0 0.0
    %2844 = vmatpush.msra.mxu0 0.0
    %2845 = vmatpush.msra.mxu0 0.0
    %v2846 = vand.u32 %v1451, 4294901760
    %v2847 = vsub.f32 %v1451, %v2846
    %v2848 = vand.u32 %v2847, 4294901760
    %v2849 = vsub.f32 %v2847, %v2848
    %v2850 = vand.u32 %v2849, 4294901760
    %2851 = vmatpush.msra.mxu0 %v2850
    %v2852 = vand.u32 %v1447, 4294901760
    %v2853 = vsub.f32 %v1447, %v2852
    %v2854 = vand.u32 %v2853, 4294901760
    %v2855 = vsub.f32 %v2853, %v2854
    %v2856 = vand.u32 %v2855, 4294901760
    %2857 = vmatpush.msra.mxu0 %v2856
    %v2858 = vand.u32 %v1652, 4294901760
    %2859 = vmatmul.f32.gmra.mxu0 %v2858
    %v2860 = vpop.f32.mrf.mxu0
    %v2861 = vadd.f32 %v2822, %v2860
    %v2862 = vand.u32 %v1655, 4294901760
    %2863 = vmatmul.f32.gmra.mxu0 %v2862
    %v2864 = vpop.f32.mrf.mxu0
    %v2865 = vadd.f32 %v2830, %v2864
    %2866 = vdwg.mxu0
    %2867 = vmatpush.msra.mxu0 0.0
    %2868 = vmatpush.msra.mxu0 0.0
    %2869 = vmatpush.msra.mxu0 0.0
    %2870 = vmatpush.msra.mxu0 0.0
    %2871 = vmatpush.msra.mxu0 0.0
    %2872 = vmatpush.msra.mxu0 0.0
    %2873 = vmatpush.msra.mxu0 0.0
    %2874 = vmatpush.msra.mxu0 0.0
    %2875 = vmatpush.msra.mxu0 0.0
    %2876 = vmatpush.msra.mxu0 0.0
    %2877 = vmatpush.msra.mxu0 0.0
    %2878 = vmatpush.msra.mxu0 0.0
    %2879 = vmatpush.msra.mxu0 0.0
    %2880 = vmatpush.msra.mxu0 0.0
    %v2881 = vand.u32 %v1451, 4294901760
    %v2882 = vsub.f32 %v1451, %v2881
    %2883 = vmatpush.msra.mxu0 %v2882
    %v2884 = vand.u32 %v1447, 4294901760
    %v2885 = vsub.f32 %v1447, %v2884
    %2886 = vmatpush.msra.mxu0 %v2885
    %v2887 = vand.u32 %v1652, 4294901760
    %v2888 = vsub.f32 %v1652, %v2887
    %2889 = vmatmul.f32.gmra.mxu0 %v2888
    %v2890 = vpop.f32.mrf.mxu0
    %v2891 = vadd.f32 %v2861, %v2890
    %v2892 = vand.u32 %v1655, 4294901760
    %v2893 = vsub.f32 %v1655, %v2892
    %2894 = vmatmul.f32.gmra.mxu0 %v2893
    %v2895 = vpop.f32.mrf.mxu0
    %v2896 = vadd.f32 %v2865, %v2895
    %2897 = vdwg.mxu0
    %2898 = vmatpush.msra.mxu0 0.0
    %2899 = vmatpush.msra.mxu0 0.0
    %2900 = vmatpush.msra.mxu0 0.0
    %2901 = vmatpush.msra.mxu0 0.0
    %2902 = vmatpush.msra.mxu0 0.0
    %2903 = vmatpush.msra.mxu0 0.0
    %2904 = vmatpush.msra.mxu0 0.0
    %2905 = vmatpush.msra.mxu0 0.0
    %2906 = vmatpush.msra.mxu0 0.0
    %2907 = vmatpush.msra.mxu0 0.0
    %2908 = vmatpush.msra.mxu0 0.0
    %2909 = vmatpush.msra.mxu0 0.0
    %2910 = vmatpush.msra.mxu0 0.0
    %2911 = vmatpush.msra.mxu0 0.0
    %v2912 = vand.u32 %v1451, 4294901760
    %2913 = vmatpush.msra.mxu0 %v2912
    %v2914 = vand.u32 %v1447, 4294901760
    %2915 = vmatpush.msra.mxu0 %v2914
    %v2916 = vand.u32 %v1652, 4294901760
    %v2917 = vsub.f32 %v1652, %v2916
    %v2918 = vand.u32 %v2917, 4294901760
    %2919 = vmatmul.f32.gmra.mxu0 %v2918
    %v2920 = vpop.f32.mrf.mxu0
    %v2921 = vadd.f32 %v2891, %v2920
    %v2922 = vand.u32 %v1655, 4294901760
    %v2923 = vsub.f32 %v1655, %v2922
    %v2924 = vand.u32 %v2923, 4294901760
    %2925 = vmatmul.f32.gmra.mxu0 %v2924
    %v2926 = vpop.f32.mrf.mxu0
    %v2927 = vadd.f32 %v2896, %v2926
    %2928 = vdwg.mxu0
    %2929 = vmatpush.msra.mxu0 0.0
    %2930 = vmatpush.msra.mxu0 0.0
    %2931 = vmatpush.msra.mxu0 0.0
    %2932 = vmatpush.msra.mxu0 0.0
    %2933 = vmatpush.msra.mxu0 0.0
    %2934 = vmatpush.msra.mxu0 0.0
    %2935 = vmatpush.msra.mxu0 0.0
    %2936 = vmatpush.msra.mxu0 0.0
    %2937 = vmatpush.msra.mxu0 0.0
    %2938 = vmatpush.msra.mxu0 0.0
    %2939 = vmatpush.msra.mxu0 0.0
    %2940 = vmatpush.msra.mxu0 0.0
    %2941 = vmatpush.msra.mxu0 0.0
    %2942 = vmatpush.msra.mxu0 0.0
    %v2943 = vand.u32 %v1451, 4294901760
    %v2944 = vsub.f32 %v1451, %v2943
    %v2945 = vand.u32 %v2944, 4294901760
    %2946 = vmatpush.msra.mxu0 %v2945
    %v2947 = vand.u32 %v1447, 4294901760
    %v2948 = vsub.f32 %v1447, %v2947
    %v2949 = vand.u32 %v2948, 4294901760
    %2950 = vmatpush.msra.mxu0 %v2949
    %v2951 = vand.u32 %v1652, 4294901760
    %2952 = vmatmul.f32.gmra.mxu0 %v2951
    %v2953 = vpop.f32.mrf.mxu0
    %v2954 = vadd.f32 %v2921, %v2953
    %v2955 = vand.u32 %v1655, 4294901760
    %2956 = vmatmul.f32.gmra.mxu0 %v2955
    %v2957 = vpop.f32.mrf.mxu0
    %v2958 = vadd.f32 %v2927, %v2957
    %2959 = vdwg.mxu0
    %2960 = vmatpush.msra.mxu0 0.0
    %2961 = vmatpush.msra.mxu0 0.0
    %2962 = vmatpush.msra.mxu0 0.0
    %2963 = vmatpush.msra.mxu0 0.0
    %2964 = vmatpush.msra.mxu0 0.0
    %2965 = vmatpush.msra.mxu0 0.0
    %2966 = vmatpush.msra.mxu0 0.0
    %2967 = vmatpush.msra.mxu0 0.0
    %2968 = vmatpush.msra.mxu0 0.0
    %2969 = vmatpush.msra.mxu0 0.0
    %2970 = vmatpush.msra.mxu0 0.0
    %2971 = vmatpush.msra.mxu0 0.0
    %2972 = vmatpush.msra.mxu0 0.0
    %2973 = vmatpush.msra.mxu0 0.0
    %v2974 = vand.u32 %v1451, 4294901760
    %2975 = vmatpush.msra.mxu0 %v2974
    %v2976 = vand.u32 %v1447, 4294901760
    %2977 = vmatpush.msra.mxu0 %v2976
    %v2978 = vand.u32 %v1652, 4294901760
    %2979 = vmatmul.f32.gmra.mxu0 %v2978
    %v2980 = vpop.f32.mrf.mxu0
    %v2981 = vadd.f32 %v2954, %v2980
    %v2982 = vand.u32 %v1655, 4294901760
    %2983 = vmatmul.f32.gmra.mxu0 %v2982
    %v2984 = vpop.f32.mrf.mxu0
    %v2985 = vadd.f32 %v2958, %v2984
    %2986 = vdwg.mxu0
    %2987 = vmatpush.msra.mxu0 0.0
    %2988 = vmatpush.msra.mxu0 0.0
    %2989 = vmatpush.msra.mxu0 0.0
    %2990 = vmatpush.msra.mxu0 0.0
    %2991 = vmatpush.msra.mxu0 0.0
    %2992 = vmatpush.msra.mxu0 0.0
    %2993 = vmatpush.msra.mxu0 0.0
    %2994 = vmatpush.msra.mxu0 0.0
    %2995 = vmatpush.msra.mxu0 0.0
    %2996 = vmatpush.msra.mxu0 0.0
    %2997 = vmatpush.msra.mxu0 0.0
    %2998 = vmatpush.msra.mxu0 0.0
    %2999 = vmatpush.msra.mxu0 0.0
    %3000 = vmatpush.msra.mxu0 0.0
    %v3001 = vand.u32 %v1647, 4294901760
    %3002 = vmatpush.msra.mxu0 %v3001
    %v3003 = vand.u32 %v1643, 4294901760
    %3004 = vmatpush.msra.mxu0 %v3003
    %v3005 = vand.u32 %v1652, 4294901760
    %v3006 = vsub.f32 %v1652, %v3005
    %v3007 = vand.u32 %v3006, 4294901760
    %v3008 = vsub.f32 %v3006, %v3007
    %v3009 = vand.u32 %v3008, 4294901760
    %3010 = vmatmul.f32.gmra.mxu0 %v3009
    %v3011 = vpop.f32.mrf.mxu0
    %v3012 = vadd.f32 0.0, %v3011
    %v3013 = vand.u32 %v1655, 4294901760
    %v3014 = vsub.f32 %v1655, %v3013
    %v3015 = vand.u32 %v3014, 4294901760
    %v3016 = vsub.f32 %v3014, %v3015
    %v3017 = vand.u32 %v3016, 4294901760
    %3018 = vmatmul.f32.gmra.mxu0 %v3017
    %v3019 = vpop.f32.mrf.mxu0
    %v3020 = vadd.f32 0.0, %v3019
    %3021 = vdwg.mxu0
    %3022 = vmatpush.msra.mxu0 0.0
    %3023 = vmatpush.msra.mxu0 0.0
    %3024 = vmatpush.msra.mxu0 0.0
    %3025 = vmatpush.msra.mxu0 0.0
    %3026 = vmatpush.msra.mxu0 0.0
    %3027 = vmatpush.msra.mxu0 0.0
    %3028 = vmatpush.msra.mxu0 0.0
    %3029 = vmatpush.msra.mxu0 0.0
    %3030 = vmatpush.msra.mxu0 0.0
    %3031 = vmatpush.msra.mxu0 0.0
    %3032 = vmatpush.msra.mxu0 0.0
    %3033 = vmatpush.msra.mxu0 0.0
    %3034 = vmatpush.msra.mxu0 0.0
    %3035 = vmatpush.msra.mxu0 0.0
    %v3036 = vand.u32 %v1647, 4294901760
    %v3037 = vsub.f32 %v1647, %v3036
    %v3038 = vand.u32 %v3037, 4294901760
    %v3039 = vsub.f32 %v3037, %v3038
    %v3040 = vand.u32 %v3039, 4294901760
    %3041 = vmatpush.msra.mxu0 %v3040
    %v3042 = vand.u32 %v1643, 4294901760
    %v3043 = vsub.f32 %v1643, %v3042
    %v3044 = vand.u32 %v3043, 4294901760
    %v3045 = vsub.f32 %v3043, %v3044
    %v3046 = vand.u32 %v3045, 4294901760
    %3047 = vmatpush.msra.mxu0 %v3046
    %v3048 = vand.u32 %v1652, 4294901760
    %3049 = vmatmul.f32.gmra.mxu0 %v3048
    %v3050 = vpop.f32.mrf.mxu0
    %v3051 = vadd.f32 %v3012, %v3050
    %v3052 = vand.u32 %v1655, 4294901760
    %3053 = vmatmul.f32.gmra.mxu0 %v3052
    %v3054 = vpop.f32.mrf.mxu0
    %v3055 = vadd.f32 %v3020, %v3054
    %3056 = vdwg.mxu0
    %3057 = vmatpush.msra.mxu0 0.0
    %3058 = vmatpush.msra.mxu0 0.0
    %3059 = vmatpush.msra.mxu0 0.0
    %3060 = vmatpush.msra.mxu0 0.0
    %3061 = vmatpush.msra.mxu0 0.0
    %3062 = vmatpush.msra.mxu0 0.0
    %3063 = vmatpush.msra.mxu0 0.0
    %3064 = vmatpush.msra.mxu0 0.0
    %3065 = vmatpush.msra.mxu0 0.0
    %3066 = vmatpush.msra.mxu0 0.0
    %3067 = vmatpush.msra.mxu0 0.0
    %3068 = vmatpush.msra.mxu0 0.0
    %3069 = vmatpush.msra.mxu0 0.0
    %3070 = vmatpush.msra.mxu0 0.0
    %v3071 = vand.u32 %v1647, 4294901760
    %v3072 = vsub.f32 %v1647, %v3071
    %3073 = vmatpush.msra.mxu0 %v3072
    %v3074 = vand.u32 %v1643, 4294901760
    %v3075 = vsub.f32 %v1643, %v3074
    %3076 = vmatpush.msra.mxu0 %v3075
    %v3077 = vand.u32 %v1652, 4294901760
    %v3078 = vsub.f32 %v1652, %v3077
    %3079 = vmatmul.f32.gmra.mxu0 %v3078
    %v3080 = vpop.f32.mrf.mxu0
    %v3081 = vadd.f32 %v3051, %v3080
    %v3082 = vand.u32 %v1655, 4294901760
    %v3083 = vsub.f32 %v1655, %v3082
    %3084 = vmatmul.f32.gmra.mxu0 %v3083
    %v3085 = vpop.f32.mrf.mxu0
    %v3086 = vadd.f32 %v3055, %v3085
    %3087 = vdwg.mxu0
    %3088 = vmatpush.msra.mxu0 0.0
    %3089 = vmatpush.msra.mxu0 0.0
    %3090 = vmatpush.msra.mxu0 0.0
    %3091 = vmatpush.msra.mxu0 0.0
    %3092 = vmatpush.msra.mxu0 0.0
    %3093 = vmatpush.msra.mxu0 0.0
    %3094 = vmatpush.msra.mxu0 0.0
    %3095 = vmatpush.msra.mxu0 0.0
    %3096 = vmatpush.msra.mxu0 0.0
    %3097 = vmatpush.msra.mxu0 0.0
    %3098 = vmatpush.msra.mxu0 0.0
    %3099 = vmatpush.msra.mxu0 0.0
    %3100 = vmatpush.msra.mxu0 0.0
    %3101 = vmatpush.msra.mxu0 0.0
    %v3102 = vand.u32 %v1647, 4294901760
    %3103 = vmatpush.msra.mxu0 %v3102
    %v3104 = vand.u32 %v1643, 4294901760
    %3105 = vmatpush.msra.mxu0 %v3104
    %v3106 = vand.u32 %v1652, 4294901760
    %v3107 = vsub.f32 %v1652, %v3106
    %v3108 = vand.u32 %v3107, 4294901760
    %3109 = vmatmul.f32.gmra.mxu0 %v3108
    %v3110 = vpop.f32.mrf.mxu0
    %v3111 = vadd.f32 %v3081, %v3110
    %v3112 = vand.u32 %v1655, 4294901760
    %v3113 = vsub.f32 %v1655, %v3112
    %v3114 = vand.u32 %v3113, 4294901760
    %3115 = vmatmul.f32.gmra.mxu0 %v3114
    %v3116 = vpop.f32.mrf.mxu0
    %v3117 = vadd.f32 %v3086, %v3116
    %3118 = vdwg.mxu0
    %3119 = vmatpush.msra.mxu0 0.0
    %3120 = vmatpush.msra.mxu0 0.0
    %3121 = vmatpush.msra.mxu0 0.0
    %3122 = vmatpush.msra.mxu0 0.0
    %3123 = vmatpush.msra.mxu0 0.0
    %3124 = vmatpush.msra.mxu0 0.0
    %3125 = vmatpush.msra.mxu0 0.0
    %3126 = vmatpush.msra.mxu0 0.0
    %3127 = vmatpush.msra.mxu0 0.0
    %3128 = vmatpush.msra.mxu0 0.0
    %3129 = vmatpush.msra.mxu0 0.0
    %3130 = vmatpush.msra.mxu0 0.0
    %3131 = vmatpush.msra.mxu0 0.0
    %3132 = vmatpush.msra.mxu0 0.0
    %v3133 = vand.u32 %v1647, 4294901760
    %v3134 = vsub.f32 %v1647, %v3133
    %v3135 = vand.u32 %v3134, 4294901760
    %3136 = vmatpush.msra.mxu0 %v3135
    %v3137 = vand.u32 %v1643, 4294901760
    %v3138 = vsub.f32 %v1643, %v3137
    %v3139 = vand.u32 %v3138, 4294901760
    %3140 = vmatpush.msra.mxu0 %v3139
    %v3141 = vand.u32 %v1652, 4294901760
    %3142 = vmatmul.f32.gmra.mxu0 %v3141
    %v3143 = vpop.f32.mrf.mxu0
    %v3144 = vadd.f32 %v3111, %v3143
    %v3145 = vand.u32 %v1655, 4294901760
    %3146 = vmatmul.f32.gmra.mxu0 %v3145
    %v3147 = vpop.f32.mrf.mxu0
    %v3148 = vadd.f32 %v3117, %v3147
    %3149 = vdwg.mxu0
    %3150 = vmatpush.msra.mxu0 0.0
    %3151 = vmatpush.msra.mxu0 0.0
    %3152 = vmatpush.msra.mxu0 0.0
    %3153 = vmatpush.msra.mxu0 0.0
    %3154 = vmatpush.msra.mxu0 0.0
    %3155 = vmatpush.msra.mxu0 0.0
    %3156 = vmatpush.msra.mxu0 0.0
    %3157 = vmatpush.msra.mxu0 0.0
    %3158 = vmatpush.msra.mxu0 0.0
    %3159 = vmatpush.msra.mxu0 0.0
    %3160 = vmatpush.msra.mxu0 0.0
    %3161 = vmatpush.msra.mxu0 0.0
    %3162 = vmatpush.msra.mxu0 0.0
    %3163 = vmatpush.msra.mxu0 0.0
    %v3164 = vand.u32 %v1647, 4294901760
    %3165 = vmatpush.msra.mxu0 %v3164
    %v3166 = vand.u32 %v1643, 4294901760
    %3167 = vmatpush.msra.mxu0 %v3166
    %v3168 = vand.u32 %v1652, 4294901760
    %3169 = vmatmul.f32.gmra.mxu0 %v3168
    %v3170 = vpop.f32.mrf.mxu0
    %v3171 = vadd.f32 %v3144, %v3170
    %v3172 = vand.u32 %v1655, 4294901760
    %3173 = vmatmul.f32.gmra.mxu0 %v3172
    %v3174 = vpop.f32.mrf.mxu0
    %v3175 = vadd.f32 %v3148, %v3174
    %3176 = vdwg.mxu0
    %3177 = vst [vmem:[#allocation8] sm:$0xff] %v1841
    %3178 = vst [vmem:[#allocation8 + $0x8] sm:$0xff] %v1845
    %3179 = vst [vmem:[#allocation8 + $0x10] sm:$0xff] %v2031
    %3180 = vst [vmem:[#allocation8 + $0x18] sm:$0xff] %v2035
    %3181 = vst [vmem:[#allocation8 + $0x20] sm:$0xff] %v2221
    %3182 = vst [vmem:[#allocation8 + $0x28] sm:$0xff] %v2225
    %3183 = vst [vmem:[#allocation8 + $0x30] sm:$0xff] %v2411
    %3184 = vst [vmem:[#allocation8 + $0x38] sm:$0xff] %v2415
    %3185 = vst [vmem:[#allocation8 + $0x40] sm:$0xff] %v2601
    %3186 = vst [vmem:[#allocation8 + $0x48] sm:$0xff] %v2605
    %3187 = vst [vmem:[#allocation8 + $0x50] sm:$0xff] %v2791
    %3188 = vst [vmem:[#allocation8 + $0x58] sm:$0xff] %v2795
    %3189 = vst [vmem:[#allocation8 + $0x60] sm:$0xff] %v2981
    %3190 = vst [vmem:[#allocation8 + $0x68] sm:$0xff] %v2985
    %3191 = vst [vmem:[#allocation8 + $0x70] sm:$0xff] %v3171
    %3192 = vst [vmem:[#allocation8 + $0x78] sm:$0xff] %v3175
    // Predicated region
    $region26: #{tpu_custom_call.1} parent=1 // pred_check
      _
    $region27: #{tpu_custom_call.1} parent=1 // pred_check_branch
      %3194 = sbr.rel (0) target = $region29
    $region28: #{tpu_custom_call.1} parent=1 // pred_region
      %3196 = vsyncadd [#allocation4], 0
      %s3197 = sshll.u32 [#allocation8], 4
      %s3198 = int_to_ptr.vmem [resolvable:$true] %s3197
      %s3199 = sshll.u32 %s3, 4
      %s3200 = int_to_ptr.hbm [resolvable:$true] %s3199
      %3205 = dma.vmem_to_hbm [thread:$0]  %s3198, 2048, %s3200, [#allocation4], 128, 128, 8
    $region29: #{tpu_custom_call.1} parent=1 // pred_fallthru
      _
    // Predicated region
    $region30: #{tpu_custom_call.1} parent=1 // pred_check
      _
    $region31: #{tpu_custom_call.1} parent=1 // pred_check_branch
      %3207 = sbr.rel (0) target = $region33
    $region32: #{tpu_custom_call.1} parent=1 // pred_region
      %3209 = dma.done [#allocation4], 2048
    $region33: #{tpu_custom_call.1} parent=1 // pred_fallthru
      _
    %3210 = vsyncpa [#allocation3], 1
    %3211 = vsyncpa [#allocation6], 1
    %3212 = vsyncpa [#allocation4], 1

</llo_original>
